<compile_context>
chip_gen: v5e
topology: v5e:2x2
jax: 0.10.0
libtpu: 0.0.40
codegen_flags: <defaults>
</compile_context>

<pallas_src>
import functools

import jax
import jax.numpy as jnp
from jax.experimental import pallas as pl
from jax.experimental.pallas import tpu as pltpu


def _round_up(x, m):
    return ((x + m - 1) // m) * m


# ----------------------------- Pallas kernels ------------------------------ #

def _branch_kernel(x_ref, wh_ref, wbig_ref, b_ref, o_ref):
    """Fused 1x1 conv + BN + bilinear resize for one image.

    x_ref:    (Hin, Win*Cin)      channels-last feature, bf16
    wh_ref:   (Hout, Hin)         H-resize matrix, bf16
    wbig_ref: (Win*Cin, Wout*64)  kron(Ww^T, W_conv*BNscale), bf16
    b_ref:    (1, Wout*64)        BN bias tiled over Wout, f32
    o_ref:    (Hout, Wout*64)     bf16
    """
    t = jnp.dot(wh_ref[...], x_ref[...], preferred_element_type=jnp.float32)
    o = jnp.dot(t.astype(jnp.bfloat16), wbig_ref[...],
                preferred_element_type=jnp.float32)
    o_ref[...] = (o + b_ref[...]).astype(o_ref.dtype)


def branch_conv_bn_resize(x_nhc, wh, wbig, bbig):
    """(N, Hin, Win*Cin) -> (N, Hout, Wout*64); conv + BN + resize, one call."""
    N, hin, winc = x_nhc.shape
    hout = wh.shape[0]
    woutc = wbig.shape[1]
    return pl.pallas_call(
        _branch_kernel,
        out_shape=jax.ShapeDtypeStruct((N, hout, woutc), jnp.bfloat16),
        grid=(N,),
        in_specs=[
            pl.BlockSpec((None, hin, winc), lambda n: (n, 0, 0)),
            pl.BlockSpec((hout, hin), lambda n: (0, 0)),
            pl.BlockSpec((winc, woutc), lambda n: (0, 0)),
            pl.BlockSpec((1, woutc), lambda n: (0, 0)),
        ],
        out_specs=pl.BlockSpec((None, hout, woutc), lambda n: (n, 0, 0)),
        compiler_params=pltpu.CompilerParams(
            dimension_semantics=("parallel",),
            vmem_limit_bytes=32 * 1024 * 1024,
        ),
    )(x_nhc, wh, wbig, bbig)


def _head_kernel(x2_ref, f3_ref, f4_ref, w2_ref, b2_ref, bl_ref, o_ref):
    """Fused head: f2 = x2 @ (W2*BNscale*w_lin) + b2'; out = sum_c f2*f3*f4 + b_lin.

    The per-row scalar results are written lane-dense as a (tm/128, 128)
    packed tile (identical row-major memory to (tm, 1))."""
    f2 = jnp.dot(x2_ref[...], w2_ref[...],
                 preferred_element_type=jnp.float32) + b2_ref[...]
    prod = f2 * f3_ref[...].astype(jnp.float32) * f4_ref[...].astype(jnp.float32)
    r = jnp.sum(prod, axis=-1) + bl_ref[0]          # (tm,)
    o_ref[...] = r.reshape(o_ref.shape)             # (tm//128, 128) lane-dense


def fusion_head(x2_mc, f3_mc, f4_mc, w2, b2, b_lin, *, tm_default=2048):
    M, c2 = x2_mc.shape
    if M <= 1024:
        # Single full tile: packed output block equals the full output array.
        tm = _round_up(M, 128)
    else:
        # >=2 grid steps (keeps both v7x TensorCores busy); tm a multiple of
        # 1024 so the packed output block stays (8,128)-aligned.
        tm = min(tm_default, _round_up(pl.cdiv(M, 2), 1024))
    rows_pk = pl.cdiv(M, 128)
    return pl.pallas_call(
        _head_kernel,
        out_shape=jax.ShapeDtypeStruct((rows_pk, 128), jnp.float32),
        grid=(pl.cdiv(M, tm),),
        in_specs=[
            pl.BlockSpec((tm, c2), lambda i: (i, 0)),
            pl.BlockSpec((tm, 64), lambda i: (i, 0)),
            pl.BlockSpec((tm, 64), lambda i: (i, 0)),
            pl.BlockSpec((c2, 64), lambda i: (0, 0)),
            pl.BlockSpec((1, 64), lambda i: (0, 0)),
            pl.BlockSpec(memory_space=pltpu.MemorySpace.SMEM),  # scalar head bias
        ],
        out_specs=pl.BlockSpec((tm // 128, 128), lambda i: (i, 0)),
        compiler_params=pltpu.CompilerParams(
            dimension_semantics=("parallel",),
            vmem_limit_bytes=32 * 1024 * 1024,
        ),
    )(x2_mc, f3_mc, f4_mc, w2, b2, b_lin)


# ------------------------------- JAX glue ---------------------------------- #

def bilinear_matrix(out_size, in_size):
    """Row-stochastic resize matrix matching F.interpolate(mode='bilinear',
    align_corners=False)."""
    scale = in_size / out_size
    i = jnp.arange(out_size, dtype=jnp.float32)
    src = jnp.maximum((i + 0.5) * scale - 0.5, 0.0)
    i0 = jnp.minimum(jnp.floor(src).astype(jnp.int32), in_size - 1)
    i1 = jnp.minimum(i0 + 1, in_size - 1)
    w1 = src - i0.astype(jnp.float32)
    w0 = 1.0 - w1
    rows = jnp.arange(out_size)
    m = jnp.zeros((out_size, in_size), jnp.float32)
    m = m.at[rows, i0].add(w0)
    m = m.at[rows, i1].add(w1)
    return m


def backbone_stub(x, projs):
    # TODO(synk): the Res2Net50 / pvt_v2_b2 backbone is not part of the provided
    # module code; it is replaced by a deterministic multi-scale stub (strided
    # average pooling + fixed channel projection, channels-last output) so the
    # Pallas-implemented Fusion + linear head is what gets exercised.
    N, C, H, W = x.shape
    feats = []
    for i, proj in enumerate(projs):
        s = 4 * (2 ** i)
        xp = x.reshape(N, C, H // s, s, W // s, s).mean(axis=(3, 5))
        feats.append(jnp.einsum("nchw,co->nhwo", xp, proj))     # NHWC
    return feats


def prepare_consts(params, x_shape, eps=1e-5):
    """Build all kernel operands ONCE per input shape, outside jit:
    BN folding, 64->1 head-weight folding, and the resize matrices
    (including the kron fold of the branch conv into the W-pass)."""
    N, _, H, W = x_shape
    sizes = [(H // (4 * 2 ** i), W // (4 * 2 ** i)) for i in range(4)]
    H2, W2 = sizes[1]

    def fold_bn(w, bn):
        gamma, beta, mean, var = bn
        scale = gamma / jnp.sqrt(var + eps)
        return w * scale[None, :], beta - mean * scale

    consts = {}
    # x2 branch: fold BN, then fold the 64->1 linear weight per channel.
    w2, b2 = fold_bn(params["conv2_w"], params["bn2"])
    wlin = params["lin_w"]                                   # (64,)
    consts["w2"] = (w2 * wlin[None, :]).astype(jnp.bfloat16)
    consts["b2"] = (b2 * wlin).reshape(1, 64).astype(jnp.float32)
    consts["b_lin"] = params["lin_b"].astype(jnp.float32)    # (1,) scalar, SMEM

    # x3/x4 branches: conv+BN folded into the W-pass resize matrix (kron).
    # (Valid because bilinear-resize rows sum to 1, so the BN bias commutes
    # with the resize and can be added after both matmuls.)
    for name, idx in (("3", 2), ("4", 3)):
        w, b = fold_bn(params["conv" + name + "_w"], params["bn" + name])
        hin, win = sizes[idx]
        wh = bilinear_matrix(H2, hin)
        ww = bilinear_matrix(W2, win)
        consts["wh" + name] = wh.astype(jnp.bfloat16)
        consts["wbig" + name] = jnp.kron(ww.T, w).astype(jnp.bfloat16)
        consts["bbig" + name] = jnp.tile(b, W2).reshape(1, W2 * 64).astype(jnp.float32)
    return consts


def weakpolyp_forward(x, params, consts):
    x1, x2, x3, x4 = backbone_stub(x, params["proj"])        # NHWC features
    del x1                                                   # Fusion ignores x1
    N, H2, W2, C2 = x2.shape
    M = N * H2 * W2

    def branch(feat, name):
        n_, h, w, c = feat.shape
        f = branch_conv_bn_resize(
            feat.reshape(n_, h, w * c).astype(jnp.bfloat16),
            consts["wh" + name], consts["wbig" + name], consts["bbig" + name])
        return f.reshape(M, 64)                              # contiguous reshape

    f3r = branch(x3, "3")
    f4r = branch(x4, "4")

    x2_mc = x2.reshape(M, C2).astype(jnp.bfloat16)
    out_pk = fusion_head(x2_mc, f3r, f4r,
                         consts["w2"], consts["b2"], consts["b_lin"])
    pred = out_pk.reshape(-1)[:M].reshape(N, H2, W2)
    return pred[:, None, :, :]                               # (N, 1, H2, W2)


def init_params(key, channels):
    ks = jax.random.split(key, 12)

    def n(k, shape, s=0.1):
        return s * jax.random.normal(k, shape, jnp.float32)

    params = {"proj": [n(ks[i], (3, c)) for i, c in enumerate(channels)]}
    for idx, (name, cin) in enumerate(zip(("2", "3", "4"), channels[1:])):
        kw, kg, kb, km, kv = jax.random.split(ks[4 + idx], 5)
        params["conv" + name + "_w"] = n(kw, (cin, 64))      # Conv2d(cin,64,1,bias=False)
        params["bn" + name] = (
            1.0 + n(kg, (64,)),                              # BN weight (gamma)
            n(kb, (64,)),                                    # BN bias (beta)
            n(km, (64,)),                                    # running_mean
            1.0 + 0.5 * jax.nn.sigmoid(jax.random.normal(kv, (64,))),  # running_var > 0
        )
    params["lin_w"] = n(ks[10], (64,))                       # Conv2d(64,1,1) weight
    params["lin_b"] = n(ks[11], (1,))                        # Conv2d(64,1,1) bias
    return params


if __name__ == "__main__":
    channels = [16, 32, 48, 64]   # small synthetic stand-ins for backbone channels
    N, H, W = 2, 64, 64
    key = jax.random.PRNGKey(0)
    kx, kp = jax.random.split(key)
    x = jax.random.normal(kx, (N, 3, H, W), jnp.float32)
    params = init_params(kp, channels)
    consts = prepare_consts(params, (N, 3, H, W))            # built once, outside jit

    fwd = jax.jit(functools.partial(weakpolyp_forward, params=params, consts=consts))
    out = fwd(x)
    jax.block_until_ready(out)
    assert out.shape == (N, 1, H // 8, W // 8), out.shape
    print("KERNEL_OK")
</pallas_src>

<mosaic_0001>
module attributes {stable_mosaic.version = 11 : i64} {
  func.func @_branch_kernel(%arg0: i32, %arg1: memref<1x4x192xbf16, #tpu.memory_space<vmem>>, %arg2: memref<8x4xbf16, #tpu.memory_space<vmem>>, %arg3: memref<192x512xbf16, #tpu.memory_space<vmem>>, %arg4: memref<1x512xf32, #tpu.memory_space<vmem>>, %arg5: memref<1x8x512xbf16, #tpu.memory_space<vmem>>) attributes {dimension_semantics = [#tpu.dimension_semantics<parallel>], iteration_bounds = array<i64: 2>, scalar_prefetch = 0 : i64, scratch_operands = 0 : i64, tpu.core_type = #tpu.core_type<tc>, window_params = [{transform_indices = @transform_0, window_bounds = array<i64: 1, 4, 192>}, {pipeline_mode = #tpu.pipeline_mode<synchronous>, transform_indices = @transform_1, window_bounds = array<i64: 8, 4>}, {pipeline_mode = #tpu.pipeline_mode<synchronous>, transform_indices = @transform_2, window_bounds = array<i64: 192, 512>}, {pipeline_mode = #tpu.pipeline_mode<synchronous>, transform_indices = @transform_3, window_bounds = array<i64: 1, 512>}, {transform_indices = @transform_4, window_bounds = array<i64: 1, 8, 512>}]} {
    %c0 = arith.constant 0 : index
    %c0_0 = arith.constant 0 : index
    %0 = vector.load %arg2[%c0, %c0_0] : memref<8x4xbf16, #tpu.memory_space<vmem>>, vector<8x4xbf16>
    %c0_1 = arith.constant 0 : index
    %c0_2 = arith.constant 0 : index
    %c0_3 = arith.constant 0 : index
    %1 = vector.load %arg1[%c0_1, %c0_2, %c0_3] : memref<1x4x192xbf16, #tpu.memory_space<vmem>>, vector<1x4x192xbf16>
    %2 = vector.shape_cast %1 : vector<1x4x192xbf16> to vector<4x192xbf16>
    %cst = arith.constant dense<0.000000e+00> : vector<8x192xf32>
    %3 = tpu.matmul %0, %2, %cst {dimension_numbers = #tpu.dot_dimension_numbers<[1], [0], [0], [1], [0, 0, 1, 1], [], []>} : vector<8x4xbf16>, vector<4x192xbf16>, vector<8x192xf32> -> vector<8x192xf32>
    %4 = arith.truncf %3 : vector<8x192xf32> to vector<8x192xbf16>
    %c0_4 = arith.constant 0 : index
    %c0_5 = arith.constant 0 : index
    %5 = vector.load %arg3[%c0_4, %c0_5] : memref<192x512xbf16, #tpu.memory_space<vmem>>, vector<192x512xbf16>
    %cst_6 = arith.constant dense<0.000000e+00> : vector<8x512xf32>
    %6 = tpu.matmul %4, %5, %cst_6 {dimension_numbers = #tpu.dot_dimension_numbers<[1], [0], [0], [1], [0, 0, 1, 1], [], []>} : vector<8x192xbf16>, vector<192x512xbf16>, vector<8x512xf32> -> vector<8x512xf32>
    %c0_7 = arith.constant 0 : index
    %c0_8 = arith.constant 0 : index
    %7 = vector.load %arg4[%c0_7, %c0_8] : memref<1x512xf32, #tpu.memory_space<vmem>>, vector<1x512xf32>
    %8 = vector.broadcast %7 : vector<1x512xf32> to vector<8x512xf32>
    %9 = arith.addf %6, %8 : vector<8x512xf32>
    %10 = arith.truncf %9 : vector<8x512xf32> to vector<8x512xbf16>
    %c0_9 = arith.constant 0 : index
    %c0_10 = arith.constant 0 : index
    %c0_11 = arith.constant 0 : index
    %11 = vector.load %arg5[%c0_9, %c0_10, %c0_11] : memref<1x8x512xbf16, #tpu.memory_space<vmem>>, vector<1x8x512xbf16>
    %12 = vector.shape_cast %11 : vector<1x8x512xbf16> to vector<8x512xbf16>
    %13 = vector.shape_cast %10 : vector<8x512xbf16> to vector<1x8x512xbf16>
    tpu.vector_store %arg5[%c0_9, %c0_10, %c0_11], %13 {strides = array<i32>} : memref<1x8x512xbf16, #tpu.memory_space<vmem>>, vector<1x8x512xbf16>,
    return
  }
  func.func @transform_0(%arg0: i32) -> (i32, i32, i32) {
    %c0_i32 = arith.constant 0 : i32
    %c0_i32_0 = arith.constant 0 : i32
    %c0_i32_1 = arith.constant 0 : i32
    return %arg0, %c0_i32, %c0_i32_0 : i32, i32, i32
  }
  func.func @transform_1(%arg0: i32) -> (i32, i32) {
    %c0_i32 = arith.constant 0 : i32
    %c0_i32_0 = arith.constant 0 : i32
    %c0_i32_1 = arith.constant 0 : i32
    return %c0_i32, %c0_i32_0 : i32, i32
  }
  func.func @transform_2(%arg0: i32) -> (i32, i32) {
    %c0_i32 = arith.constant 0 : i32
    %c0_i32_0 = arith.constant 0 : i32
    %c0_i32_1 = arith.constant 0 : i32
    return %c0_i32, %c0_i32_0 : i32, i32
  }
  func.func @transform_3(%arg0: i32) -> (i32, i32) {
    %c0_i32 = arith.constant 0 : i32
    %c0_i32_0 = arith.constant 0 : i32
    %c0_i32_1 = arith.constant 0 : i32
    return %c0_i32, %c0_i32_0 : i32, i32
  }
  func.func @transform_4(%arg0: i32) -> (i32, i32, i32) {
    %c0_i32 = arith.constant 0 : i32
    %c0_i32_0 = arith.constant 0 : i32
    %c0_i32_1 = arith.constant 0 : i32
    return %arg0, %c0_i32, %c0_i32_0 : i32, i32, i32
  }
}

module attributes {stable_mosaic.version = 11 : i64} {
  func.func @_branch_kernel(%arg0: i32, %arg1: memref<1x2x128xbf16, #tpu.memory_space<vmem>>, %arg2: memref<8x2xbf16, #tpu.memory_space<vmem>>, %arg3: memref<128x512xbf16, #tpu.memory_space<vmem>>, %arg4: memref<1x512xf32, #tpu.memory_space<vmem>>, %arg5: memref<1x8x512xbf16, #tpu.memory_space<vmem>>) attributes {dimension_semantics = [#tpu.dimension_semantics<parallel>], iteration_bounds = array<i64: 2>, scalar_prefetch = 0 : i64, scratch_operands = 0 : i64, tpu.core_type = #tpu.core_type<tc>, window_params = [{transform_indices = @transform_0, window_bounds = array<i64: 1, 2, 128>}, {pipeline_mode = #tpu.pipeline_mode<synchronous>, transform_indices = @transform_1, window_bounds = array<i64: 8, 2>}, {pipeline_mode = #tpu.pipeline_mode<synchronous>, transform_indices = @transform_2, window_bounds = array<i64: 128, 512>}, {pipeline_mode = #tpu.pipeline_mode<synchronous>, transform_indices = @transform_3, window_bounds = array<i64: 1, 512>}, {transform_indices = @transform_4, window_bounds = array<i64: 1, 8, 512>}]} {
    %c0 = arith.constant 0 : index
    %c0_0 = arith.constant 0 : index
    %0 = vector.load %arg2[%c0, %c0_0] : memref<8x2xbf16, #tpu.memory_space<vmem>>, vector<8x2xbf16>
    %c0_1 = arith.constant 0 : index
    %c0_2 = arith.constant 0 : index
    %c0_3 = arith.constant 0 : index
    %1 = vector.load %arg1[%c0_1, %c0_2, %c0_3] : memref<1x2x128xbf16, #tpu.memory_space<vmem>>, vector<1x2x128xbf16>
    %2 = vector.shape_cast %1 : vector<1x2x128xbf16> to vector<2x128xbf16>
    %cst = arith.constant dense<0.000000e+00> : vector<8x128xf32>
    %3 = tpu.matmul %0, %2, %cst {dimension_numbers = #tpu.dot_dimension_numbers<[1], [0], [0], [1], [0, 0, 1, 1], [], []>} : vector<8x2xbf16>, vector<2x128xbf16>, vector<8x128xf32> -> vector<8x128xf32>
    %4 = arith.truncf %3 : vector<8x128xf32> to vector<8x128xbf16>
    %c0_4 = arith.constant 0 : index
    %c0_5 = arith.constant 0 : index
    %5 = vector.load %arg3[%c0_4, %c0_5] : memref<128x512xbf16, #tpu.memory_space<vmem>>, vector<128x512xbf16>
    %cst_6 = arith.constant dense<0.000000e+00> : vector<8x512xf32>
    %6 = tpu.matmul %4, %5, %cst_6 {dimension_numbers = #tpu.dot_dimension_numbers<[1], [0], [0], [1], [0, 0, 1, 1], [], []>} : vector<8x128xbf16>, vector<128x512xbf16>, vector<8x512xf32> -> vector<8x512xf32>
    %c0_7 = arith.constant 0 : index
    %c0_8 = arith.constant 0 : index
    %7 = vector.load %arg4[%c0_7, %c0_8] : memref<1x512xf32, #tpu.memory_space<vmem>>, vector<1x512xf32>
    %8 = vector.broadcast %7 : vector<1x512xf32> to vector<8x512xf32>
    %9 = arith.addf %6, %8 : vector<8x512xf32>
    %10 = arith.truncf %9 : vector<8x512xf32> to vector<8x512xbf16>
    %c0_9 = arith.constant 0 : index
    %c0_10 = arith.constant 0 : index
    %c0_11 = arith.constant 0 : index
    %11 = vector.load %arg5[%c0_9, %c0_10, %c0_11] : memref<1x8x512xbf16, #tpu.memory_space<vmem>>, vector<1x8x512xbf16>
    %12 = vector.shape_cast %11 : vector<1x8x512xbf16> to vector<8x512xbf16>
    %13 = vector.shape_cast %10 : vector<8x512xbf16> to vector<1x8x512xbf16>
    tpu.vector_store %arg5[%c0_9, %c0_10, %c0_11], %13 {strides = array<i32>} : memref<1x8x512xbf16, #tpu.memory_space<vmem>>, vector<1x8x512xbf16>,
    return
  }
  func.func @transform_0(%arg0: i32) -> (i32, i32, i32) {
    %c0_i32 = arith.constant 0 : i32
    %c0_i32_0 = arith.constant 0 : i32
    %c0_i32_1 = arith.constant 0 : i32
    return %arg0, %c0_i32, %c0_i32_0 : i32, i32, i32
  }
  func.func @transform_1(%arg0: i32) -> (i32, i32) {
    %c0_i32 = arith.constant 0 : i32
    %c0_i32_0 = arith.constant 0 : i32
    %c0_i32_1 = arith.constant 0 : i32
    return %c0_i32, %c0_i32_0 : i32, i32
  }
  func.func @transform_2(%arg0: i32) -> (i32, i32) {
    %c0_i32 = arith.constant 0 : i32
    %c0_i32_0 = arith.constant 0 : i32
    %c0_i32_1 = arith.constant 0 : i32
    return %c0_i32, %c0_i32_0 : i32, i32
  }
  func.func @transform_3(%arg0: i32) -> (i32, i32) {
    %c0_i32 = arith.constant 0 : i32
    %c0_i32_0 = arith.constant 0 : i32
    %c0_i32_1 = arith.constant 0 : i32
    return %c0_i32, %c0_i32_0 : i32, i32
  }
  func.func @transform_4(%arg0: i32) -> (i32, i32, i32) {
    %c0_i32 = arith.constant 0 : i32
    %c0_i32_0 = arith.constant 0 : i32
    %c0_i32_1 = arith.constant 0 : i32
    return %arg0, %c0_i32, %c0_i32_0 : i32, i32, i32
  }
}

module attributes {stable_mosaic.version = 11 : i64} {
  func.func @_head_kernel(%arg0: i32, %arg1: memref<128x32xbf16, #tpu.memory_space<vmem>>, %arg2: memref<128x64xbf16, #tpu.memory_space<vmem>>, %arg3: memref<128x64xbf16, #tpu.memory_space<vmem>>, %arg4: memref<32x64xbf16, #tpu.memory_space<vmem>>, %arg5: memref<1x64xf32, #tpu.memory_space<vmem>>, %arg6: memref<1xf32, #tpu.memory_space<smem>>, %arg7: memref<1x128xf32, #tpu.memory_space<vmem>>) attributes {dimension_semantics = [#tpu.dimension_semantics<parallel>], iteration_bounds = array<i64: 1>, scalar_prefetch = 0 : i64, scratch_operands = 0 : i64, tpu.core_type = #tpu.core_type<tc>, window_params = [{transform_indices = @transform_0, window_bounds = array<i64: 128, 32>}, {transform_indices = @transform_1, window_bounds = array<i64: 128, 64>}, {transform_indices = @transform_2, window_bounds = array<i64: 128, 64>}, {pipeline_mode = #tpu.pipeline_mode<synchronous>, transform_indices = @transform_3, window_bounds = array<i64: 32, 64>}, {pipeline_mode = #tpu.pipeline_mode<synchronous>, transform_indices = @transform_4, window_bounds = array<i64: 1, 64>}, {transform_indices = @transform_5, window_bounds = array<i64: 1>}, {transform_indices = @transform_6, window_bounds = array<i64: 1, 128>}]} {
    %c0 = arith.constant 0 : index
    %c0_0 = arith.constant 0 : index
    %0 = vector.load %arg1[%c0, %c0_0] : memref<128x32xbf16, #tpu.memory_space<vmem>>, vector<128x32xbf16>
    %c0_1 = arith.constant 0 : index
    %c0_2 = arith.constant 0 : index
    %1 = vector.load %arg4[%c0_1, %c0_2] : memref<32x64xbf16, #tpu.memory_space<vmem>>, vector<32x64xbf16>
    %cst = arith.constant dense<0.000000e+00> : vector<128x64xf32>
    %2 = tpu.matmul %0, %1, %cst {dimension_numbers = #tpu.dot_dimension_numbers<[1], [0], [0], [1], [0, 0, 1, 1], [], []>} : vector<128x32xbf16>, vector<32x64xbf16>, vector<128x64xf32> -> vector<128x64xf32>
    %c0_3 = arith.constant 0 : index
    %c0_4 = arith.constant 0 : index
    %3 = vector.load %arg5[%c0_3, %c0_4] : memref<1x64xf32, #tpu.memory_space<vmem>>, vector<1x64xf32>
    %4 = vector.broadcast %3 : vector<1x64xf32> to vector<128x64xf32>
    %5 = arith.addf %2, %4 : vector<128x64xf32>
    %c0_5 = arith.constant 0 : index
    %c0_6 = arith.constant 0 : index
    %6 = vector.load %arg2[%c0_5, %c0_6] : memref<128x64xbf16, #tpu.memory_space<vmem>>, vector<128x64xbf16>
    %7 = arith.extf %6 : vector<128x64xbf16> to vector<128x64xf32>
    %8 = arith.mulf %5, %7 : vector<128x64xf32>
    %c0_7 = arith.constant 0 : index
    %c0_8 = arith.constant 0 : index
    %9 = vector.load %arg3[%c0_7, %c0_8] : memref<128x64xbf16, #tpu.memory_space<vmem>>, vector<128x64xbf16>
    %10 = arith.extf %9 : vector<128x64xbf16> to vector<128x64xf32>
    %11 = arith.mulf %8, %10 : vector<128x64xf32>
    %cst_9 = arith.constant dense<0.000000e+00> : vector<128xf32>
    %12 = vector.multi_reduction <add>, %11, %cst_9 [1] : vector<128x64xf32> to vector<128xf32>
    %c0_10 = arith.constant 0 : index
    %13 = memref.load %arg6[%c0_10] : memref<1xf32, #tpu.memory_space<smem>>
    %14 = vector.broadcast %13 : f32 to vector<128xf32>
    %15 = arith.addf %12, %14 : vector<128xf32>
    %16 = vector.shape_cast %15 : vector<128xf32> to vector<1x128xf32>
    %c0_11 = arith.constant 0 : index
    %c0_12 = arith.constant 0 : index
    %17 = vector.load %arg7[%c0_11, %c0_12] : memref<1x128xf32, #tpu.memory_space<vmem>>, vector<1x128xf32>
    tpu.vector_store %arg7[%c0_11, %c0_12], %16 {strides = array<i32>} : memref<1x128xf32, #tpu.memory_space<vmem>>, vector<1x128xf32>,
    return
  }
  func.func @transform_0(%arg0: i32) -> (i32, i32) {
    %c0_i32 = arith.constant 0 : i32
    %c0_i32_0 = arith.constant 0 : i32
    return %arg0, %c0_i32 : i32, i32
  }
  func.func @transform_1(%arg0: i32) -> (i32, i32) {
    %c0_i32 = arith.constant 0 : i32
    %c0_i32_0 = arith.constant 0 : i32
    return %arg0, %c0_i32 : i32, i32
  }
  func.func @transform_2(%arg0: i32) -> (i32, i32) {
    %c0_i32 = arith.constant 0 : i32
    %c0_i32_0 = arith.constant 0 : i32
    return %arg0, %c0_i32 : i32, i32
  }
  func.func @transform_3(%arg0: i32) -> (i32, i32) {
    %c0_i32 = arith.constant 0 : i32
    %c0_i32_0 = arith.constant 0 : i32
    %c0_i32_1 = arith.constant 0 : i32
    return %c0_i32, %c0_i32_0 : i32, i32
  }
  func.func @transform_4(%arg0: i32) -> (i32, i32) {
    %c0_i32 = arith.constant 0 : i32
    %c0_i32_0 = arith.constant 0 : i32
    %c0_i32_1 = arith.constant 0 : i32
    return %c0_i32, %c0_i32_0 : i32, i32
  }
  func.func @transform_5(%arg0: i32) -> i32 {
    %c0_i32 = arith.constant 0 : i32
    %c0_i32_0 = arith.constant 0 : i32
    return %c0_i32 : i32
  }
  func.func @transform_6(%arg0: i32) -> (i32, i32) {
    %c0_i32 = arith.constant 0 : i32
    %c0_i32_0 = arith.constant 0 : i32
    return %arg0, %c0_i32 : i32, i32
  }
}

</mosaic_0001>

<llo_original>
// kernel: weakpolyp_forward.4
$region0: #{weakpolyp_forward.4}
  #allocation0 [shape = 'u32[]', space=smem, size = 0x4, offset = 0x4, fixed_abs, tag = 'smem constant byte address 0x4 - core index']
  #allocation1 [shape = 'u32[72,128]{1,0:T(1,128)}', space=vmem, size = 0x9000, scoped, tag = 'internal scratch']
  %s0 = inlined_call_operand.vmem [shape: bf16[2,2,128], index: 0, kind: input, shape index: {}]
  %s1 = inlined_call_operand.vmem [shape: bf16[8,2], index: 1, kind: input, shape index: {}]
  %s2 = inlined_call_operand.vmem [shape: bf16[128,512], index: 2, kind: input, shape index: {}]
  %s3 = inlined_call_operand.vmem [shape: f32[1,512], index: 3, kind: input, shape index: {}]
  %s4 = inlined_call_operand.vmem [shape: bf16[2,8,512], index: 4, kind: output, shape index: {}]
  %s5 = sld [smem:[#allocation0]]
  $region49: #{weakpolyp_forward.4} parent=0
    _
  %s7 = ssub.s32 1, %s5
  %s8 = scalar_select 0, %s7, %s5
  loop: start=0, step=1, limit=4
  $region2: #{weakpolyp_forward.4} parent=0 // loop_pre_header
    _
  $region3: #{weakpolyp_forward.4} parent=0 // loop_header
    %s10 = sphi 0, %s14
    %p11 = scmp.ge.s32.totalorder %s10, 4
    %s20 = sphi 0, %s22
    %s23 = sphi 0, %s20
    %s24 = sphi 0, %s23
    %s40 = sphi 0, %s24
    %s44 = sphi 0, %s44
    %s46 = sphi 0, %s44
    %s47 = sphi 0, %s46
    %s61 = sphi 0, %s47
    %s65 = sphi 0, %s65
    %s67 = sphi 0, %s65
    %s68 = sphi 0, %s67
    %s82 = sphi 0, %s68
    %s86 = sphi 0, %s86
    %s88 = sphi 0, %s86
    %s89 = sphi 0, %s88
    %s103 = sphi 0, %s89
    %s109 = sphi 0, %s111
    %s112 = sphi 0, %s109
    %s113 = sphi 0, %s112
    %s129 = sphi 0, %s113
  $region4: #{weakpolyp_forward.4} parent=0 // loop_header_branch
    %13 = sbr.rel (%p11) target = $region8
  $region5: #{weakpolyp_forward.4} parent=0 // loop_body
    %s15 = ssub.s32 %s10, 1
    %s16 = ssub.s32 %s10, 2
    %s17 = sadd.s32 %s10, 1
    %s18 = ssub.s32 %s10, %s17
    %p19 = scmp.eq.s32.totalorder %s18, 0
    %s21 = sadd.s32 %s20, 1
    %s22 = scalar_select %p19, %s20, %s21
    %p25 = pneg %p19
    %p26 = scmp.eq.s32.totalorder %s10, 1
    %p27 = por %p25, %p26
    %p28 = scmp.ne.s32.totalorder %s20, %s23
    %p29 = scmp.eq.s32.totalorder %s10, 0
    %p30 = por %p28, %p29
    %p31 = scmp.ne.s32.totalorder %s20, %s23
    %p32 = scmp.eq.s32.totalorder %s15, 1
    %p33 = por %p31, %p32
    %p34 = scmp.ne.s32.totalorder %s23, %s24
    %p35 = scmp.eq.s32.totalorder %s15, 0
    %p36 = por %p34, %p35
    %p37 = scmp.ne.s32.totalorder %s23, %s24
    %p38 = scmp.eq.s32.totalorder %s16, 1
    %p39 = por %p37, %p38
    %p41 = scmp.ne.s32.totalorder %s24, %s40
    %p42 = scmp.eq.s32.totalorder %s16, 0
    %p43 = por %p41, %p42
    %s45 = sadd.s32 %s44, 1
    %p48 = scmp.eq.s32.totalorder %s10, 1
    %p49 = scmp.ne.s32.totalorder %s44, %s46
    %p50 = scmp.eq.s32.totalorder %s10, 0
    %p51 = por %p49, %p50
    %p52 = scmp.ne.s32.totalorder %s44, %s46
    %p53 = scmp.eq.s32.totalorder %s15, 1
    %p54 = por %p52, %p53
    %p55 = scmp.ne.s32.totalorder %s46, %s47
    %p56 = scmp.eq.s32.totalorder %s15, 0
    %p57 = por %p55, %p56
    %p58 = scmp.ne.s32.totalorder %s46, %s47
    %p59 = scmp.eq.s32.totalorder %s16, 1
    %p60 = por %p58, %p59
    %p62 = scmp.ne.s32.totalorder %s47, %s61
    %p63 = scmp.eq.s32.totalorder %s16, 0
    %p64 = por %p62, %p63
    %s66 = sadd.s32 %s65, 1
    %p69 = scmp.eq.s32.totalorder %s10, 1
    %p70 = scmp.ne.s32.totalorder %s65, %s67
    %p71 = scmp.eq.s32.totalorder %s10, 0
    %p72 = por %p70, %p71
    %p73 = scmp.ne.s32.totalorder %s65, %s67
    %p74 = scmp.eq.s32.totalorder %s15, 1
    %p75 = por %p73, %p74
    %p76 = scmp.ne.s32.totalorder %s67, %s68
    %p77 = scmp.eq.s32.totalorder %s15, 0
    %p78 = por %p76, %p77
    %p79 = scmp.ne.s32.totalorder %s67, %s68
    %p80 = scmp.eq.s32.totalorder %s16, 1
    %p81 = por %p79, %p80
    %p83 = scmp.ne.s32.totalorder %s68, %s82
    %p84 = scmp.eq.s32.totalorder %s16, 0
    %p85 = por %p83, %p84
    %s87 = sadd.s32 %s86, 1
    %p90 = scmp.eq.s32.totalorder %s10, 1
    %p91 = scmp.ne.s32.totalorder %s86, %s88
    %p92 = scmp.eq.s32.totalorder %s10, 0
    %p93 = por %p91, %p92
    %p94 = scmp.ne.s32.totalorder %s86, %s88
    %p95 = scmp.eq.s32.totalorder %s15, 1
    %p96 = por %p94, %p95
    %p97 = scmp.ne.s32.totalorder %s88, %s89
    %p98 = scmp.eq.s32.totalorder %s15, 0
    %p99 = por %p97, %p98
    %p100 = scmp.ne.s32.totalorder %s88, %s89
    %p101 = scmp.eq.s32.totalorder %s16, 1
    %p102 = por %p100, %p101
    %p104 = scmp.ne.s32.totalorder %s89, %s103
    %p105 = scmp.eq.s32.totalorder %s16, 0
    %p106 = por %p104, %p105
    %s107 = ssub.s32 %s10, %s17
    %p108 = scmp.eq.s32.totalorder %s107, 0
    %s110 = sadd.s32 %s109, 1
    %s111 = scalar_select %p108, %s109, %s110
    %p114 = pneg %p108
    %p115 = scmp.eq.s32.totalorder %s10, 1
    %p116 = por %p114, %p115
    %p117 = scmp.ne.s32.totalorder %s109, %s112
    %p118 = scmp.eq.s32.totalorder %s10, 0
    %p119 = por %p117, %p118
    %p120 = scmp.ne.s32.totalorder %s109, %s112
    %p121 = scmp.eq.s32.totalorder %s15, 1
    %p122 = por %p120, %p121
    %p123 = scmp.ne.s32.totalorder %s112, %s113
    %p124 = scmp.eq.s32.totalorder %s15, 0
    %p125 = por %p123, %p124
    %p126 = scmp.ne.s32.totalorder %s112, %s113
    %p127 = scmp.eq.s32.totalorder %s16, 1
    %p128 = por %p126, %p127
    %p130 = scmp.ne.s32.totalorder %s113, %s129
    %p131 = scmp.eq.s32.totalorder %s16, 0
    %p132 = por %p130, %p131
    %p133 = scmp.le.s32.totalorder 1, %s10
    %p134 = scmp.lt.s32.totalorder %s10, 3
    %p135 = pnand %p133, %p134
    %p136 = pneg %p135
    // Predicated region
    $region9: #{weakpolyp_forward.4} parent=5 // pred_check
      _
    $region10: #{weakpolyp_forward.4} parent=5 // pred_check_branch
      %138 = sbr.rel (%p135) target = $region12
    $region11: #{weakpolyp_forward.4} parent=5 // pred_region
      %s139 = ssub.s32 %s10, 1
      // Predicated region
      $region13: #{weakpolyp_forward.4} parent=11 // pred_check
        %p140 = pneg %p57
      $region14: #{weakpolyp_forward.4} parent=11 // pred_check_branch
        %142 = sbr.rel (%p140) target = $region16
      $region15: #{weakpolyp_forward.4} parent=11 // pred_region
        _
      $region16: #{weakpolyp_forward.4} parent=11 // pred_fallthru
        _
      // Predicated region
      $region17: #{weakpolyp_forward.4} parent=11 // pred_check
        %p143 = pneg %p78
      $region18: #{weakpolyp_forward.4} parent=11 // pred_check_branch
        %145 = sbr.rel (%p143) target = $region20
      $region19: #{weakpolyp_forward.4} parent=11 // pred_region
        _
      $region20: #{weakpolyp_forward.4} parent=11 // pred_fallthru
        _
      // Predicated region
      $region21: #{weakpolyp_forward.4} parent=11 // pred_check
        %p146 = pneg %p99
      $region22: #{weakpolyp_forward.4} parent=11 // pred_check_branch
        %148 = sbr.rel (%p146) target = $region24
      $region23: #{weakpolyp_forward.4} parent=11 // pred_region
        _
      $region24: #{weakpolyp_forward.4} parent=11 // pred_fallthru
        _
    $region12: #{weakpolyp_forward.4} parent=5 // pred_fallthru
      _
    %p149 = scmp.lt.s32.totalorder %s10, 2
    // Predicated region
    $region25: #{weakpolyp_forward.4} parent=5 // pred_check
      %p150 = pneg %p149
    $region26: #{weakpolyp_forward.4} parent=5 // pred_check_branch
      %152 = sbr.rel (%p150) target = $region28
    $region27: #{weakpolyp_forward.4} parent=5 // pred_region
      // Predicated region
      $region29: #{weakpolyp_forward.4} parent=27 // pred_check
        %p153 = pneg %p30
      $region30: #{weakpolyp_forward.4} parent=27 // pred_check_branch
        %155 = sbr.rel (%p153) target = $region32
      $region31: #{weakpolyp_forward.4} parent=27 // pred_region
        %p156 = scmp.lt.s32.totalorder %s10, 1
        %s157 = scalar_select %p156, %s10, 1
        %s158 = scalar_lea.vmem %s0, %s157
      $region32: #{weakpolyp_forward.4} parent=27 // pred_fallthru
        _
    $region28: #{weakpolyp_forward.4} parent=5 // pred_fallthru
      _
    %p159 = scmp.le.s32.totalorder 1, %s10
    %p160 = scmp.lt.s32.totalorder %s10, 3
    %p161 = pnand %p159, %p160
    %p162 = pneg %p161
    // Predicated region
    $region33: #{weakpolyp_forward.4} parent=5 // pred_check
      _
    $region34: #{weakpolyp_forward.4} parent=5 // pred_check_branch
      %164 = sbr.rel (%p161) target = $region36
    $region35: #{weakpolyp_forward.4} parent=5 // pred_region
      %s165 = ssub.s32 %s10, 1
      %p166 = scmp.lt.s32.totalorder %s15, 1
      %s167 = scalar_select %p166, %s15, 1
      %s168 = scalar_lea.vmem %s0, %s167
      %p169 = pneg %p36
      %p170 = pneg %p33
      %p171 = pneg %p57
      %p172 = pneg %p54
      %p173 = pneg %p78
      %p174 = pneg %p75
      %p175 = pneg %p99
      %p176 = pneg %p96
      %p177 = pneg %p125
      %p178 = pneg %p122
      %p179 = scmp.lt.s32.totalorder %s15, 1
      %s180 = scalar_select %p179, %s15, 1
      %s181 = smul.addr %s180, 4
      %s182 = smul.addr %s181, 4
      %s183 = scalar_lea.vmem %s4, %s182
      %p184 = scmp.lt.s32.totalorder %s15, 1
      %s185 = scalar_select %p184, %s15, 1
      %s186 = scalar_lea.vmem %s0, %s185
      %p187 = scmp.lt.s32.totalorder %s15, 1
      %s188 = scalar_select %p187, %s15, 1
      %s189 = smul.addr %s188, 4
      %s190 = smul.addr %s189, 4
      %s191 = scalar_lea.vmem %s4, %s190
      %v193 = vld [vmem:[%s1] sm:$0xf]
      %v194 = vld [vmem:[%s186] sm:$0x1]
      %vm195 = vcmask 15360
      %v197 = vsel %vm195, %v193, 0
      %vm199 = vcmask 1040384
      %v201 = vsel %vm199, %v194, 0
      %203 = vmatpush.bf16.msra.mxu0 0
      %204 = vmatpush.bf16.msra.mxu0 0
      %205 = vmatpush.bf16.msra.mxu0 0
      %206 = vmatpush.bf16.msra.mxu0 0
      %207 = vmatpush.bf16.msra.mxu0 0
      %208 = vmatpush.bf16.msra.mxu0 0
      %209 = vmatpush.bf16.msra.mxu0 0
      %210 = vmatpush.bf16.msra.mxu0 %v201
      %211 = vmatmul.bf16.gmra.mxu0 %v197
      %v212 = vpop.f32.mrf.mxu0
      %v213 = vadd.f32 0.0, %v212
      %v214 = vpop.f32.mrf.mxu0
      %215 = vdwg.mxu0
      %v216 = vpack.c.bf16 %v213, %v213
      %v217 = vld [vmem:[%s2] sm:$0xff]
      %v218 = vld [vmem:[%s2 + $0x8] sm:$0xff]
      %v219 = vld [vmem:[%s2 + $0x10] sm:$0xff]
      %v220 = vld [vmem:[%s2 + $0x18] sm:$0xff]
      %v221 = vld [vmem:[%s2 + $0x20] sm:$0xff]
      %v222 = vld [vmem:[%s2 + $0x28] sm:$0xff]
      %v223 = vld [vmem:[%s2 + $0x30] sm:$0xff]
      %v224 = vld [vmem:[%s2 + $0x38] sm:$0xff]
      %v225 = vld [vmem:[%s2 + $0x40] sm:$0xff]
      %v226 = vld [vmem:[%s2 + $0x48] sm:$0xff]
      %v227 = vld [vmem:[%s2 + $0x50] sm:$0xff]
      %v228 = vld [vmem:[%s2 + $0x58] sm:$0xff]
      %v229 = vld [vmem:[%s2 + $0x60] sm:$0xff]
      %v230 = vld [vmem:[%s2 + $0x68] sm:$0xff]
      %v231 = vld [vmem:[%s2 + $0x70] sm:$0xff]
      %v232 = vld [vmem:[%s2 + $0x78] sm:$0xff]
      %v233 = vld [vmem:[%s2 + $0x80] sm:$0xff]
      %v234 = vld [vmem:[%s2 + $0x88] sm:$0xff]
      %v235 = vld [vmem:[%s2 + $0x90] sm:$0xff]
      %v236 = vld [vmem:[%s2 + $0x98] sm:$0xff]
      %v237 = vld [vmem:[%s2 + $0xa0] sm:$0xff]
      %v238 = vld [vmem:[%s2 + $0xa8] sm:$0xff]
      %v239 = vld [vmem:[%s2 + $0xb0] sm:$0xff]
      %v240 = vld [vmem:[%s2 + $0xb8] sm:$0xff]
      %v241 = vld [vmem:[%s2 + $0xc0] sm:$0xff]
      %v242 = vld [vmem:[%s2 + $0xc8] sm:$0xff]
      %v243 = vld [vmem:[%s2 + $0xd0] sm:$0xff]
      %v244 = vld [vmem:[%s2 + $0xd8] sm:$0xff]
      %v245 = vld [vmem:[%s2 + $0xe0] sm:$0xff]
      %v246 = vld [vmem:[%s2 + $0xe8] sm:$0xff]
      %v247 = vld [vmem:[%s2 + $0xf0] sm:$0xff]
      %v248 = vld [vmem:[%s2 + $0xf8] sm:$0xff]
      %v249 = vld [vmem:[%s3] sm:$0xf]
      %v251 = vperm.slane %v249, 0
      %v252 = vperm.slane %v249, 1
      %v253 = vperm.slane %v249, 2
      %v254 = vperm.slane %v249, 3
      %v291 = vunpack.c.l.b16 %v217
      %v292 = vunpack.c.h.b16 %v217
      %v293 = vunpack.c.l.b16 %v218
      %v294 = vunpack.c.h.b16 %v218
      %v295 = vunpack.c.l.b16 %v219
      %v296 = vunpack.c.h.b16 %v219
      %v297 = vunpack.c.l.b16 %v220
      %v298 = vunpack.c.h.b16 %v220
      %v299 = vunpack.c.l.b16 %v221
      %v300 = vunpack.c.h.b16 %v221
      %v301 = vunpack.c.l.b16 %v222
      %v302 = vunpack.c.h.b16 %v222
      %v303 = vunpack.c.l.b16 %v223
      %v304 = vunpack.c.h.b16 %v223
      %v305 = vunpack.c.l.b16 %v224
      %v306 = vunpack.c.h.b16 %v224
      %v307 = vunpack.c.l.b16 %v225
      %v308 = vunpack.c.h.b16 %v225
      %v309 = vunpack.c.l.b16 %v226
      %v310 = vunpack.c.h.b16 %v226
      %v311 = vunpack.c.l.b16 %v227
      %v312 = vunpack.c.h.b16 %v227
      %v313 = vunpack.c.l.b16 %v228
      %v314 = vunpack.c.h.b16 %v228
      %v315 = vunpack.c.l.b16 %v229
      %v316 = vunpack.c.h.b16 %v229
      %v317 = vunpack.c.l.b16 %v230
      %v318 = vunpack.c.h.b16 %v230
      %v319 = vunpack.c.l.b16 %v231
      %v320 = vunpack.c.h.b16 %v231
      %v321 = vunpack.c.l.b16 %v232
      %v322 = vunpack.c.h.b16 %v232
      %v323 = vunpack.c.l.b16 %v233
      %v324 = vunpack.c.h.b16 %v233
      %v325 = vunpack.c.l.b16 %v234
      %v326 = vunpack.c.h.b16 %v234
      %v327 = vunpack.c.l.b16 %v235
      %v328 = vunpack.c.h.b16 %v235
      %v329 = vunpack.c.l.b16 %v236
      %v330 = vunpack.c.h.b16 %v236
      %v331 = vunpack.c.l.b16 %v237
      %v332 = vunpack.c.h.b16 %v237
      %v333 = vunpack.c.l.b16 %v238
      %v334 = vunpack.c.h.b16 %v238
      %v335 = vunpack.c.l.b16 %v239
      %v336 = vunpack.c.h.b16 %v239
      %v337 = vunpack.c.l.b16 %v240
      %v338 = vunpack.c.h.b16 %v240
      %v339 = vunpack.c.l.b16 %v241
      %v340 = vunpack.c.h.b16 %v241
      %v341 = vunpack.c.l.b16 %v242
      %v342 = vunpack.c.h.b16 %v242
      %v343 = vunpack.c.l.b16 %v243
      %v344 = vunpack.c.h.b16 %v243
      %v345 = vunpack.c.l.b16 %v244
      %v346 = vunpack.c.h.b16 %v244
      %v347 = vunpack.c.l.b16 %v245
      %v348 = vunpack.c.h.b16 %v245
      %v349 = vunpack.c.l.b16 %v246
      %v350 = vunpack.c.h.b16 %v246
      %v351 = vunpack.c.l.b16 %v247
      %v352 = vunpack.c.h.b16 %v247
      %v353 = vunpack.c.l.b16 %v248
      %v354 = vunpack.c.h.b16 %v248
      %v355 = vpack.c.b16 %v295, %v291
      %v356 = vpack.c.b16 %v296, %v292
      %v357 = vpack.c.b16 %v297, %v293
      %v358 = vpack.c.b16 %v298, %v294
      %v359 = vpack.c.b16 %v303, %v299
      %v360 = vpack.c.b16 %v304, %v300
      %v361 = vpack.c.b16 %v305, %v301
      %v362 = vpack.c.b16 %v306, %v302
      %v363 = vpack.c.b16 %v311, %v307
      %v364 = vpack.c.b16 %v312, %v308
      %v365 = vpack.c.b16 %v313, %v309
      %v366 = vpack.c.b16 %v314, %v310
      %v367 = vpack.c.b16 %v319, %v315
      %v368 = vpack.c.b16 %v320, %v316
      %v369 = vpack.c.b16 %v321, %v317
      %v370 = vpack.c.b16 %v322, %v318
      %v371 = vpack.c.b16 %v327, %v323
      %v372 = vpack.c.b16 %v328, %v324
      %v373 = vpack.c.b16 %v329, %v325
      %v374 = vpack.c.b16 %v330, %v326
      %v375 = vpack.c.b16 %v335, %v331
      %v376 = vpack.c.b16 %v336, %v332
      %v377 = vpack.c.b16 %v337, %v333
      %v378 = vpack.c.b16 %v338, %v334
      %v379 = vpack.c.b16 %v343, %v339
      %v380 = vpack.c.b16 %v344, %v340
      %v381 = vpack.c.b16 %v345, %v341
      %v382 = vpack.c.b16 %v346, %v342
      %v383 = vpack.c.b16 %v351, %v347
      %v384 = vpack.c.b16 %v352, %v348
      %v385 = vpack.c.b16 %v353, %v349
      %v386 = vpack.c.b16 %v354, %v350
      %419 = vmatpush.bf16.msra.mxu0 %v383
      %420 = vmatpush.bf16.msra.mxu0 %v379
      %421 = vmatpush.bf16.msra.mxu0 %v375
      %422 = vmatpush.bf16.msra.mxu0 %v371
      %423 = vmatpush.bf16.msra.mxu0 %v367
      %424 = vmatpush.bf16.msra.mxu0 %v363
      %425 = vmatpush.bf16.msra.mxu0 %v359
      %426 = vmatpush.bf16.msra.mxu0 %v355
      %427 = vmatmul.bf16.gmra.mxu0 %v216
      %v428 = vpop.f32.mrf.mxu0
      %v429 = vadd.f32 %v251, %v428
      %v430 = vpop.f32.mrf.mxu0
      %431 = vdwg.mxu0
      %432 = vmatpush.bf16.msra.mxu0 %v384
      %433 = vmatpush.bf16.msra.mxu0 %v380
      %434 = vmatpush.bf16.msra.mxu0 %v376
      %435 = vmatpush.bf16.msra.mxu0 %v372
      %436 = vmatpush.bf16.msra.mxu0 %v368
      %437 = vmatpush.bf16.msra.mxu0 %v364
      %438 = vmatpush.bf16.msra.mxu0 %v360
      %439 = vmatpush.bf16.msra.mxu0 %v356
      %440 = vmatmul.bf16.gmra.mxu0 %v216
      %v441 = vpop.f32.mrf.mxu0
      %v442 = vadd.f32 %v252, %v441
      %v443 = vpop.f32.mrf.mxu0
      %444 = vdwg.mxu0
      %445 = vmatpush.bf16.msra.mxu0 %v385
      %446 = vmatpush.bf16.msra.mxu0 %v381
      %447 = vmatpush.bf16.msra.mxu0 %v377
      %448 = vmatpush.bf16.msra.mxu0 %v373
      %449 = vmatpush.bf16.msra.mxu0 %v369
      %450 = vmatpush.bf16.msra.mxu0 %v365
      %451 = vmatpush.bf16.msra.mxu0 %v361
      %452 = vmatpush.bf16.msra.mxu0 %v357
      %453 = vmatmul.bf16.gmra.mxu0 %v216
      %v454 = vpop.f32.mrf.mxu0
      %v455 = vadd.f32 %v253, %v454
      %v456 = vpop.f32.mrf.mxu0
      %457 = vdwg.mxu0
      %458 = vmatpush.bf16.msra.mxu0 %v386
      %459 = vmatpush.bf16.msra.mxu0 %v382
      %460 = vmatpush.bf16.msra.mxu0 %v378
      %461 = vmatpush.bf16.msra.mxu0 %v374
      %462 = vmatpush.bf16.msra.mxu0 %v370
      %463 = vmatpush.bf16.msra.mxu0 %v366
      %464 = vmatpush.bf16.msra.mxu0 %v362
      %465 = vmatpush.bf16.msra.mxu0 %v358
      %466 = vmatmul.bf16.gmra.mxu0 %v216
      %v467 = vpop.f32.mrf.mxu0
      %v468 = vadd.f32 %v254, %v467
      %v469 = vpop.f32.mrf.mxu0
      %470 = vdwg.mxu0
      %v471 = vpack.c.bf16 %v442, %v429
      %v472 = vpack.c.bf16 %v468, %v455
      %473 = vst [vmem:[%s191] sm:$0xff] %v471
      %474 = vst [vmem:[%s191 + $0x8] sm:$0xff] %v472
      %p475 = scmp.lt.s32.totalorder %s15, 1
      %s476 = scalar_select %p475, %s15, 1
      %s477 = smul.addr %s476, 4
      %s478 = smul.addr %s477, 4
      %s479 = scalar_lea.vmem %s4, %s478
      // Predicated region
      $region37: #{weakpolyp_forward.4} parent=35 // pred_check
        %p480 = pneg %p122
      $region38: #{weakpolyp_forward.4} parent=35 // pred_check_branch
        %482 = sbr.rel (%p480) target = $region40
      $region39: #{weakpolyp_forward.4} parent=35 // pred_region
        _
      $region40: #{weakpolyp_forward.4} parent=35 // pred_fallthru
        _
    $region36: #{weakpolyp_forward.4} parent=5 // pred_fallthru
      _
    %p483 = scmp.le.s32.totalorder 2, %s10
    // Predicated region
    $region41: #{weakpolyp_forward.4} parent=5 // pred_check
      %p484 = pneg %p483
    $region42: #{weakpolyp_forward.4} parent=5 // pred_check_branch
      %486 = sbr.rel (%p484) target = $region44
    $region43: #{weakpolyp_forward.4} parent=5 // pred_region
      %s487 = ssub.s32 %s10, 2
      // Predicated region
      $region45: #{weakpolyp_forward.4} parent=43 // pred_check
        %p488 = pneg %p128
      $region46: #{weakpolyp_forward.4} parent=43 // pred_check_branch
        %490 = sbr.rel (%p488) target = $region48
      $region47: #{weakpolyp_forward.4} parent=43 // pred_region
        %p491 = scmp.lt.s32.totalorder %s16, 1
        %s492 = scalar_select %p491, %s16, 1
        %s493 = smul.addr %s492, 4
        %s494 = smul.addr %s493, 4
        %s495 = scalar_lea.vmem %s4, %s494
      $region48: #{weakpolyp_forward.4} parent=43 // pred_fallthru
        _
    $region44: #{weakpolyp_forward.4} parent=5 // pred_fallthru
      _
  $region6: #{weakpolyp_forward.4} parent=0 // loop_footer
    %s14 = sadd.s32 1, %s10
  $region7: #{weakpolyp_forward.4} parent=0 // loop_footer_branch
    %9 = sbr.rel target = $region3
  $region8: #{weakpolyp_forward.4} parent=0 // loop_exit
    _

// kernel: weakpolyp_forward.3
$region0: #{weakpolyp_forward.3}
  #allocation0 [shape = 'u32[]', space=smem, size = 0x4, offset = 0x4, fixed_abs, tag = 'smem constant byte address 0x4 - core index']
  #allocation1 [shape = 'u32[72,128]{1,0:T(1,128)}', space=vmem, size = 0x9000, scoped, tag = 'internal scratch']
  %s0 = inlined_call_operand.vmem [shape: bf16[2,4,192], index: 0, kind: input, shape index: {}]
  %s1 = inlined_call_operand.vmem [shape: bf16[8,4], index: 1, kind: input, shape index: {}]
  %s2 = inlined_call_operand.vmem [shape: bf16[192,512], index: 2, kind: input, shape index: {}]
  %s3 = inlined_call_operand.vmem [shape: f32[1,512], index: 3, kind: input, shape index: {}]
  %s4 = inlined_call_operand.vmem [shape: bf16[2,8,512], index: 4, kind: output, shape index: {}]
  %s5 = sld [smem:[#allocation0]]
  $region49: #{weakpolyp_forward.3} parent=0
    _
  %s7 = ssub.s32 1, %s5
  %s8 = scalar_select 0, %s7, %s5
  loop: start=0, step=1, limit=4
  $region2: #{weakpolyp_forward.3} parent=0 // loop_pre_header
    _
  $region3: #{weakpolyp_forward.3} parent=0 // loop_header
    %s10 = sphi 0, %s14
    %p11 = scmp.ge.s32.totalorder %s10, 4
    %s20 = sphi 0, %s22
    %s23 = sphi 0, %s20
    %s24 = sphi 0, %s23
    %s40 = sphi 0, %s24
    %s44 = sphi 0, %s44
    %s46 = sphi 0, %s44
    %s47 = sphi 0, %s46
    %s61 = sphi 0, %s47
    %s65 = sphi 0, %s65
    %s67 = sphi 0, %s65
    %s68 = sphi 0, %s67
    %s82 = sphi 0, %s68
    %s86 = sphi 0, %s86
    %s88 = sphi 0, %s86
    %s89 = sphi 0, %s88
    %s103 = sphi 0, %s89
    %s109 = sphi 0, %s111
    %s112 = sphi 0, %s109
    %s113 = sphi 0, %s112
    %s129 = sphi 0, %s113
  $region4: #{weakpolyp_forward.3} parent=0 // loop_header_branch
    %13 = sbr.rel (%p11) target = $region8
  $region5: #{weakpolyp_forward.3} parent=0 // loop_body
    %s15 = ssub.s32 %s10, 1
    %s16 = ssub.s32 %s10, 2
    %s17 = sadd.s32 %s10, 1
    %s18 = ssub.s32 %s10, %s17
    %p19 = scmp.eq.s32.totalorder %s18, 0
    %s21 = sadd.s32 %s20, 1
    %s22 = scalar_select %p19, %s20, %s21
    %p25 = pneg %p19
    %p26 = scmp.eq.s32.totalorder %s10, 1
    %p27 = por %p25, %p26
    %p28 = scmp.ne.s32.totalorder %s20, %s23
    %p29 = scmp.eq.s32.totalorder %s10, 0
    %p30 = por %p28, %p29
    %p31 = scmp.ne.s32.totalorder %s20, %s23
    %p32 = scmp.eq.s32.totalorder %s15, 1
    %p33 = por %p31, %p32
    %p34 = scmp.ne.s32.totalorder %s23, %s24
    %p35 = scmp.eq.s32.totalorder %s15, 0
    %p36 = por %p34, %p35
    %p37 = scmp.ne.s32.totalorder %s23, %s24
    %p38 = scmp.eq.s32.totalorder %s16, 1
    %p39 = por %p37, %p38
    %p41 = scmp.ne.s32.totalorder %s24, %s40
    %p42 = scmp.eq.s32.totalorder %s16, 0
    %p43 = por %p41, %p42
    %s45 = sadd.s32 %s44, 1
    %p48 = scmp.eq.s32.totalorder %s10, 1
    %p49 = scmp.ne.s32.totalorder %s44, %s46
    %p50 = scmp.eq.s32.totalorder %s10, 0
    %p51 = por %p49, %p50
    %p52 = scmp.ne.s32.totalorder %s44, %s46
    %p53 = scmp.eq.s32.totalorder %s15, 1
    %p54 = por %p52, %p53
    %p55 = scmp.ne.s32.totalorder %s46, %s47
    %p56 = scmp.eq.s32.totalorder %s15, 0
    %p57 = por %p55, %p56
    %p58 = scmp.ne.s32.totalorder %s46, %s47
    %p59 = scmp.eq.s32.totalorder %s16, 1
    %p60 = por %p58, %p59
    %p62 = scmp.ne.s32.totalorder %s47, %s61
    %p63 = scmp.eq.s32.totalorder %s16, 0
    %p64 = por %p62, %p63
    %s66 = sadd.s32 %s65, 1
    %p69 = scmp.eq.s32.totalorder %s10, 1
    %p70 = scmp.ne.s32.totalorder %s65, %s67
    %p71 = scmp.eq.s32.totalorder %s10, 0
    %p72 = por %p70, %p71
    %p73 = scmp.ne.s32.totalorder %s65, %s67
    %p74 = scmp.eq.s32.totalorder %s15, 1
    %p75 = por %p73, %p74
    %p76 = scmp.ne.s32.totalorder %s67, %s68
    %p77 = scmp.eq.s32.totalorder %s15, 0
    %p78 = por %p76, %p77
    %p79 = scmp.ne.s32.totalorder %s67, %s68
    %p80 = scmp.eq.s32.totalorder %s16, 1
    %p81 = por %p79, %p80
    %p83 = scmp.ne.s32.totalorder %s68, %s82
    %p84 = scmp.eq.s32.totalorder %s16, 0
    %p85 = por %p83, %p84
    %s87 = sadd.s32 %s86, 1
    %p90 = scmp.eq.s32.totalorder %s10, 1
    %p91 = scmp.ne.s32.totalorder %s86, %s88
    %p92 = scmp.eq.s32.totalorder %s10, 0
    %p93 = por %p91, %p92
    %p94 = scmp.ne.s32.totalorder %s86, %s88
    %p95 = scmp.eq.s32.totalorder %s15, 1
    %p96 = por %p94, %p95
    %p97 = scmp.ne.s32.totalorder %s88, %s89
    %p98 = scmp.eq.s32.totalorder %s15, 0
    %p99 = por %p97, %p98
    %p100 = scmp.ne.s32.totalorder %s88, %s89
    %p101 = scmp.eq.s32.totalorder %s16, 1
    %p102 = por %p100, %p101
    %p104 = scmp.ne.s32.totalorder %s89, %s103
    %p105 = scmp.eq.s32.totalorder %s16, 0
    %p106 = por %p104, %p105
    %s107 = ssub.s32 %s10, %s17
    %p108 = scmp.eq.s32.totalorder %s107, 0
    %s110 = sadd.s32 %s109, 1
    %s111 = scalar_select %p108, %s109, %s110
    %p114 = pneg %p108
    %p115 = scmp.eq.s32.totalorder %s10, 1
    %p116 = por %p114, %p115
    %p117 = scmp.ne.s32.totalorder %s109, %s112
    %p118 = scmp.eq.s32.totalorder %s10, 0
    %p119 = por %p117, %p118
    %p120 = scmp.ne.s32.totalorder %s109, %s112
    %p121 = scmp.eq.s32.totalorder %s15, 1
    %p122 = por %p120, %p121
    %p123 = scmp.ne.s32.totalorder %s112, %s113
    %p124 = scmp.eq.s32.totalorder %s15, 0
    %p125 = por %p123, %p124
    %p126 = scmp.ne.s32.totalorder %s112, %s113
    %p127 = scmp.eq.s32.totalorder %s16, 1
    %p128 = por %p126, %p127
    %p130 = scmp.ne.s32.totalorder %s113, %s129
    %p131 = scmp.eq.s32.totalorder %s16, 0
    %p132 = por %p130, %p131
    %p133 = scmp.le.s32.totalorder 1, %s10
    %p134 = scmp.lt.s32.totalorder %s10, 3
    %p135 = pnand %p133, %p134
    %p136 = pneg %p135
    // Predicated region
    $region9: #{weakpolyp_forward.3} parent=5 // pred_check
      _
    $region10: #{weakpolyp_forward.3} parent=5 // pred_check_branch
      %138 = sbr.rel (%p135) target = $region12
    $region11: #{weakpolyp_forward.3} parent=5 // pred_region
      %s139 = ssub.s32 %s10, 1
      // Predicated region
      $region13: #{weakpolyp_forward.3} parent=11 // pred_check
        %p140 = pneg %p57
      $region14: #{weakpolyp_forward.3} parent=11 // pred_check_branch
        %142 = sbr.rel (%p140) target = $region16
      $region15: #{weakpolyp_forward.3} parent=11 // pred_region
        _
      $region16: #{weakpolyp_forward.3} parent=11 // pred_fallthru
        _
      // Predicated region
      $region17: #{weakpolyp_forward.3} parent=11 // pred_check
        %p143 = pneg %p78
      $region18: #{weakpolyp_forward.3} parent=11 // pred_check_branch
        %145 = sbr.rel (%p143) target = $region20
      $region19: #{weakpolyp_forward.3} parent=11 // pred_region
        _
      $region20: #{weakpolyp_forward.3} parent=11 // pred_fallthru
        _
      // Predicated region
      $region21: #{weakpolyp_forward.3} parent=11 // pred_check
        %p146 = pneg %p99
      $region22: #{weakpolyp_forward.3} parent=11 // pred_check_branch
        %148 = sbr.rel (%p146) target = $region24
      $region23: #{weakpolyp_forward.3} parent=11 // pred_region
        _
      $region24: #{weakpolyp_forward.3} parent=11 // pred_fallthru
        _
    $region12: #{weakpolyp_forward.3} parent=5 // pred_fallthru
      _
    %p149 = scmp.lt.s32.totalorder %s10, 2
    // Predicated region
    $region25: #{weakpolyp_forward.3} parent=5 // pred_check
      %p150 = pneg %p149
    $region26: #{weakpolyp_forward.3} parent=5 // pred_check_branch
      %152 = sbr.rel (%p150) target = $region28
    $region27: #{weakpolyp_forward.3} parent=5 // pred_region
      // Predicated region
      $region29: #{weakpolyp_forward.3} parent=27 // pred_check
        %p153 = pneg %p30
      $region30: #{weakpolyp_forward.3} parent=27 // pred_check_branch
        %155 = sbr.rel (%p153) target = $region32
      $region31: #{weakpolyp_forward.3} parent=27 // pred_region
        %p156 = scmp.lt.s32.totalorder %s10, 1
        %s157 = scalar_select %p156, %s10, 1
        %s158 = smul.addr %s157, 2
        %s159 = smul.addr %s158, 2
        %s160 = scalar_lea.vmem %s0, %s159
      $region32: #{weakpolyp_forward.3} parent=27 // pred_fallthru
        _
    $region28: #{weakpolyp_forward.3} parent=5 // pred_fallthru
      _
    %p161 = scmp.le.s32.totalorder 1, %s10
    %p162 = scmp.lt.s32.totalorder %s10, 3
    %p163 = pnand %p161, %p162
    %p164 = pneg %p163
    // Predicated region
    $region33: #{weakpolyp_forward.3} parent=5 // pred_check
      _
    $region34: #{weakpolyp_forward.3} parent=5 // pred_check_branch
      %166 = sbr.rel (%p163) target = $region36
    $region35: #{weakpolyp_forward.3} parent=5 // pred_region
      %s167 = ssub.s32 %s10, 1
      %p168 = scmp.lt.s32.totalorder %s15, 1
      %s169 = scalar_select %p168, %s15, 1
      %s170 = smul.addr %s169, 2
      %s171 = smul.addr %s170, 2
      %s172 = scalar_lea.vmem %s0, %s171
      %p173 = pneg %p36
      %p174 = pneg %p33
      %p175 = pneg %p57
      %p176 = pneg %p54
      %p177 = pneg %p78
      %p178 = pneg %p75
      %p179 = pneg %p99
      %p180 = pneg %p96
      %p181 = pneg %p125
      %p182 = pneg %p122
      %p183 = scmp.lt.s32.totalorder %s15, 1
      %s184 = scalar_select %p183, %s15, 1
      %s185 = smul.addr %s184, 4
      %s186 = smul.addr %s185, 4
      %s187 = scalar_lea.vmem %s4, %s186
      %p188 = scmp.lt.s32.totalorder %s15, 1
      %s189 = scalar_select %p188, %s15, 1
      %s190 = smul.addr %s189, 2
      %s191 = smul.addr %s190, 2
      %s192 = scalar_lea.vmem %s0, %s191
      %p193 = scmp.lt.s32.totalorder %s15, 1
      %s194 = scalar_select %p193, %s15, 1
      %s195 = smul.addr %s194, 4
      %s196 = smul.addr %s195, 4
      %s197 = scalar_lea.vmem %s4, %s196
      %v199 = vld [vmem:[%s1] sm:$0xf]
      %v200 = vld [vmem:[%s192] sm:$0xf]
      %202 = vst [vmem:[#allocation1] ss:$4 sm:$0xff] %v200
      %v203 = vld.sshfl [vmem:[#allocation1] sm:$0xff pattern:$0x73625140]
      %v204 = vld.sshfl [vmem:[#allocation1 + $0x8] sm:$0xff pattern:$0x73625140]
      %vm205 = vcmask 31744
      %v207 = vsel %vm205, %v199, 0
      %vm209 = vcmask 1041408
      %v210 = vsel %vm209, %v203, 0
      %v212 = vsel %vm209, %v204, 0
      %214 = vmatpush.bf16.msra.mxu0 0
      %215 = vmatpush.bf16.msra.mxu0 0
      %216 = vmatpush.bf16.msra.mxu0 0
      %217 = vmatpush.bf16.msra.mxu0 0
      %218 = vmatpush.bf16.msra.mxu0 0
      %219 = vmatpush.bf16.msra.mxu0 0
      %220 = vmatpush.bf16.msra.mxu0 0
      %221 = vmatpush.bf16.msra.mxu0 %v210
      %222 = vmatmul.bf16.gmra.mxu0 %v207
      %v223 = vpop.f32.mrf.mxu0
      %v224 = vadd.f32 0.0, %v223
      %v225 = vpop.f32.mrf.mxu0
      %226 = vdwg.mxu0
      %227 = vmatpush.bf16.msra.mxu0 0
      %228 = vmatpush.bf16.msra.mxu0 0
      %229 = vmatpush.bf16.msra.mxu0 0
      %230 = vmatpush.bf16.msra.mxu0 0
      %231 = vmatpush.bf16.msra.mxu0 0
      %232 = vmatpush.bf16.msra.mxu0 0
      %233 = vmatpush.bf16.msra.mxu0 0
      %234 = vmatpush.bf16.msra.mxu0 %v212
      %235 = vmatmul.bf16.gmra.mxu0 %v207
      %v236 = vpop.f32.mrf.mxu0
      %v237 = vadd.f32 0.0, %v236
      %v238 = vpop.f32.mrf.mxu0
      %239 = vdwg.mxu0
      %v240 = vpack.c.bf16 %v224, %v224
      %v241 = vpack.c.bf16 %v237, %v237
      %v242 = vld [vmem:[%s2] sm:$0xff]
      %v243 = vld [vmem:[%s2 + $0x8] sm:$0xff]
      %v244 = vld [vmem:[%s2 + $0x10] sm:$0xff]
      %v245 = vld [vmem:[%s2 + $0x18] sm:$0xff]
      %v246 = vld [vmem:[%s2 + $0x20] sm:$0xff]
      %v247 = vld [vmem:[%s2 + $0x28] sm:$0xff]
      %v248 = vld [vmem:[%s2 + $0x30] sm:$0xff]
      %v249 = vld [vmem:[%s2 + $0x38] sm:$0xff]
      %v250 = vld [vmem:[%s2 + $0x40] sm:$0xff]
      %v251 = vld [vmem:[%s2 + $0x48] sm:$0xff]
      %v252 = vld [vmem:[%s2 + $0x50] sm:$0xff]
      %v253 = vld [vmem:[%s2 + $0x58] sm:$0xff]
      %v254 = vld [vmem:[%s2 + $0x60] sm:$0xff]
      %v255 = vld [vmem:[%s2 + $0x68] sm:$0xff]
      %v256 = vld [vmem:[%s2 + $0x70] sm:$0xff]
      %v257 = vld [vmem:[%s2 + $0x78] sm:$0xff]
      %v258 = vld [vmem:[%s2 + $0x80] sm:$0xff]
      %v259 = vld [vmem:[%s2 + $0x88] sm:$0xff]
      %v260 = vld [vmem:[%s2 + $0x90] sm:$0xff]
      %v261 = vld [vmem:[%s2 + $0x98] sm:$0xff]
      %v262 = vld [vmem:[%s2 + $0xa0] sm:$0xff]
      %v263 = vld [vmem:[%s2 + $0xa8] sm:$0xff]
      %v264 = vld [vmem:[%s2 + $0xb0] sm:$0xff]
      %v265 = vld [vmem:[%s2 + $0xb8] sm:$0xff]
      %v266 = vld [vmem:[%s2 + $0xc0] sm:$0xff]
      %v267 = vld [vmem:[%s2 + $0xc8] sm:$0xff]
      %v268 = vld [vmem:[%s2 + $0xd0] sm:$0xff]
      %v269 = vld [vmem:[%s2 + $0xd8] sm:$0xff]
      %v270 = vld [vmem:[%s2 + $0xe0] sm:$0xff]
      %v271 = vld [vmem:[%s2 + $0xe8] sm:$0xff]
      %v272 = vld [vmem:[%s2 + $0xf0] sm:$0xff]
      %v273 = vld [vmem:[%s2 + $0xf8] sm:$0xff]
      %v274 = vld [vmem:[%s2 + $0x100] sm:$0xff]
      %v275 = vld [vmem:[%s2 + $0x108] sm:$0xff]
      %v276 = vld [vmem:[%s2 + $0x110] sm:$0xff]
      %v277 = vld [vmem:[%s2 + $0x118] sm:$0xff]
      %v278 = vld [vmem:[%s2 + $0x120] sm:$0xff]
      %v279 = vld [vmem:[%s2 + $0x128] sm:$0xff]
      %v280 = vld [vmem:[%s2 + $0x130] sm:$0xff]
      %v281 = vld [vmem:[%s2 + $0x138] sm:$0xff]
      %v282 = vld [vmem:[%s2 + $0x140] sm:$0xff]
      %v283 = vld [vmem:[%s2 + $0x148] sm:$0xff]
      %v284 = vld [vmem:[%s2 + $0x150] sm:$0xff]
      %v285 = vld [vmem:[%s2 + $0x158] sm:$0xff]
      %v286 = vld [vmem:[%s2 + $0x160] sm:$0xff]
      %v287 = vld [vmem:[%s2 + $0x168] sm:$0xff]
      %v288 = vld [vmem:[%s2 + $0x170] sm:$0xff]
      %v289 = vld [vmem:[%s2 + $0x178] sm:$0xff]
      %v290 = vld [vmem:[%s3] sm:$0xf]
      %v292 = vperm.slane %v290, 0
      %v293 = vperm.slane %v290, 1
      %v294 = vperm.slane %v290, 2
      %v295 = vperm.slane %v290, 3
      %v348 = vunpack.c.l.b16 %v242
      %v349 = vunpack.c.h.b16 %v242
      %v350 = vunpack.c.l.b16 %v243
      %v351 = vunpack.c.h.b16 %v243
      %v352 = vunpack.c.l.b16 %v244
      %v353 = vunpack.c.h.b16 %v244
      %v354 = vunpack.c.l.b16 %v245
      %v355 = vunpack.c.h.b16 %v245
      %v356 = vunpack.c.l.b16 %v246
      %v357 = vunpack.c.h.b16 %v246
      %v358 = vunpack.c.l.b16 %v247
      %v359 = vunpack.c.h.b16 %v247
      %v360 = vunpack.c.l.b16 %v248
      %v361 = vunpack.c.h.b16 %v248
      %v362 = vunpack.c.l.b16 %v249
      %v363 = vunpack.c.h.b16 %v249
      %v364 = vunpack.c.l.b16 %v250
      %v365 = vunpack.c.h.b16 %v250
      %v366 = vunpack.c.l.b16 %v251
      %v367 = vunpack.c.h.b16 %v251
      %v368 = vunpack.c.l.b16 %v252
      %v369 = vunpack.c.h.b16 %v252
      %v370 = vunpack.c.l.b16 %v253
      %v371 = vunpack.c.h.b16 %v253
      %v372 = vunpack.c.l.b16 %v254
      %v373 = vunpack.c.h.b16 %v254
      %v374 = vunpack.c.l.b16 %v255
      %v375 = vunpack.c.h.b16 %v255
      %v376 = vunpack.c.l.b16 %v256
      %v377 = vunpack.c.h.b16 %v256
      %v378 = vunpack.c.l.b16 %v257
      %v379 = vunpack.c.h.b16 %v257
      %v380 = vunpack.c.l.b16 %v258
      %v381 = vunpack.c.h.b16 %v258
      %v382 = vunpack.c.l.b16 %v259
      %v383 = vunpack.c.h.b16 %v259
      %v384 = vunpack.c.l.b16 %v260
      %v385 = vunpack.c.h.b16 %v260
      %v386 = vunpack.c.l.b16 %v261
      %v387 = vunpack.c.h.b16 %v261
      %v388 = vunpack.c.l.b16 %v262
      %v389 = vunpack.c.h.b16 %v262
      %v390 = vunpack.c.l.b16 %v263
      %v391 = vunpack.c.h.b16 %v263
      %v392 = vunpack.c.l.b16 %v264
      %v393 = vunpack.c.h.b16 %v264
      %v394 = vunpack.c.l.b16 %v265
      %v395 = vunpack.c.h.b16 %v265
      %v396 = vunpack.c.l.b16 %v266
      %v397 = vunpack.c.h.b16 %v266
      %v398 = vunpack.c.l.b16 %v267
      %v399 = vunpack.c.h.b16 %v267
      %v400 = vunpack.c.l.b16 %v268
      %v401 = vunpack.c.h.b16 %v268
      %v402 = vunpack.c.l.b16 %v269
      %v403 = vunpack.c.h.b16 %v269
      %v404 = vunpack.c.l.b16 %v270
      %v405 = vunpack.c.h.b16 %v270
      %v406 = vunpack.c.l.b16 %v271
      %v407 = vunpack.c.h.b16 %v271
      %v408 = vunpack.c.l.b16 %v272
      %v409 = vunpack.c.h.b16 %v272
      %v410 = vunpack.c.l.b16 %v273
      %v411 = vunpack.c.h.b16 %v273
      %v412 = vunpack.c.l.b16 %v274
      %v413 = vunpack.c.h.b16 %v274
      %v414 = vunpack.c.l.b16 %v275
      %v415 = vunpack.c.h.b16 %v275
      %v416 = vunpack.c.l.b16 %v276
      %v417 = vunpack.c.h.b16 %v276
      %v418 = vunpack.c.l.b16 %v277
      %v419 = vunpack.c.h.b16 %v277
      %v420 = vunpack.c.l.b16 %v278
      %v421 = vunpack.c.h.b16 %v278
      %v422 = vunpack.c.l.b16 %v279
      %v423 = vunpack.c.h.b16 %v279
      %v424 = vunpack.c.l.b16 %v280
      %v425 = vunpack.c.h.b16 %v280
      %v426 = vunpack.c.l.b16 %v281
      %v427 = vunpack.c.h.b16 %v281
      %v428 = vunpack.c.l.b16 %v282
      %v429 = vunpack.c.h.b16 %v282
      %v430 = vunpack.c.l.b16 %v283
      %v431 = vunpack.c.h.b16 %v283
      %v432 = vunpack.c.l.b16 %v284
      %v433 = vunpack.c.h.b16 %v284
      %v434 = vunpack.c.l.b16 %v285
      %v435 = vunpack.c.h.b16 %v285
      %v436 = vunpack.c.l.b16 %v286
      %v437 = vunpack.c.h.b16 %v286
      %v438 = vunpack.c.l.b16 %v287
      %v439 = vunpack.c.h.b16 %v287
      %v440 = vunpack.c.l.b16 %v288
      %v441 = vunpack.c.h.b16 %v288
      %v442 = vunpack.c.l.b16 %v289
      %v443 = vunpack.c.h.b16 %v289
      %v444 = vpack.c.b16 %v352, %v348
      %v445 = vpack.c.b16 %v353, %v349
      %v446 = vpack.c.b16 %v354, %v350
      %v447 = vpack.c.b16 %v355, %v351
      %v448 = vpack.c.b16 %v360, %v356
      %v449 = vpack.c.b16 %v361, %v357
      %v450 = vpack.c.b16 %v362, %v358
      %v451 = vpack.c.b16 %v363, %v359
      %v452 = vpack.c.b16 %v368, %v364
      %v453 = vpack.c.b16 %v369, %v365
      %v454 = vpack.c.b16 %v370, %v366
      %v455 = vpack.c.b16 %v371, %v367
      %v456 = vpack.c.b16 %v376, %v372
      %v457 = vpack.c.b16 %v377, %v373
      %v458 = vpack.c.b16 %v378, %v374
      %v459 = vpack.c.b16 %v379, %v375
      %v460 = vpack.c.b16 %v384, %v380
      %v461 = vpack.c.b16 %v385, %v381
      %v462 = vpack.c.b16 %v386, %v382
      %v463 = vpack.c.b16 %v387, %v383
      %v464 = vpack.c.b16 %v392, %v388
      %v465 = vpack.c.b16 %v393, %v389
      %v466 = vpack.c.b16 %v394, %v390
      %v467 = vpack.c.b16 %v395, %v391
      %v468 = vpack.c.b16 %v400, %v396
      %v469 = vpack.c.b16 %v401, %v397
      %v470 = vpack.c.b16 %v402, %v398
      %v471 = vpack.c.b16 %v403, %v399
      %v472 = vpack.c.b16 %v408, %v404
      %v473 = vpack.c.b16 %v409, %v405
      %v474 = vpack.c.b16 %v410, %v406
      %v475 = vpack.c.b16 %v411, %v407
      %v476 = vpack.c.b16 %v416, %v412
      %v477 = vpack.c.b16 %v417, %v413
      %v478 = vpack.c.b16 %v418, %v414
      %v479 = vpack.c.b16 %v419, %v415
      %v480 = vpack.c.b16 %v424, %v420
      %v481 = vpack.c.b16 %v425, %v421
      %v482 = vpack.c.b16 %v426, %v422
      %v483 = vpack.c.b16 %v427, %v423
      %v484 = vpack.c.b16 %v432, %v428
      %v485 = vpack.c.b16 %v433, %v429
      %v486 = vpack.c.b16 %v434, %v430
      %v487 = vpack.c.b16 %v435, %v431
      %v488 = vpack.c.b16 %v440, %v436
      %v489 = vpack.c.b16 %v441, %v437
      %v490 = vpack.c.b16 %v442, %v438
      %v491 = vpack.c.b16 %v443, %v439
      %vm540 = vcmask 523264
      %v542 = vsel %vm540, %v241, 0
      %544 = vmatpush.bf16.msra.mxu0 %v472
      %545 = vmatpush.bf16.msra.mxu0 %v468
      %546 = vmatpush.bf16.msra.mxu0 %v464
      %547 = vmatpush.bf16.msra.mxu0 %v460
      %548 = vmatpush.bf16.msra.mxu0 %v456
      %549 = vmatpush.bf16.msra.mxu0 %v452
      %550 = vmatpush.bf16.msra.mxu0 %v448
      %551 = vmatpush.bf16.msra.mxu0 %v444
      %552 = vmatmul.bf16.gmra.mxu0 %v240
      %v553 = vpop.f32.mrf.mxu0
      %v554 = vadd.f32 %v292, %v553
      %v555 = vpop.f32.mrf.mxu0
      %556 = vdwg.mxu0
      %557 = vmatpush.bf16.msra.mxu0 0
      %558 = vmatpush.bf16.msra.mxu0 0
      %559 = vmatpush.bf16.msra.mxu0 0
      %560 = vmatpush.bf16.msra.mxu0 0
      %561 = vmatpush.bf16.msra.mxu0 %v488
      %562 = vmatpush.bf16.msra.mxu0 %v484
      %563 = vmatpush.bf16.msra.mxu0 %v480
      %564 = vmatpush.bf16.msra.mxu0 %v476
      %565 = vmatmul.bf16.gmra.mxu0 %v542
      %v566 = vpop.f32.mrf.mxu0
      %v567 = vadd.f32 %v554, %v566
      %v568 = vpop.f32.mrf.mxu0
      %569 = vdwg.mxu0
      %570 = vmatpush.bf16.msra.mxu0 %v473
      %571 = vmatpush.bf16.msra.mxu0 %v469
      %572 = vmatpush.bf16.msra.mxu0 %v465
      %573 = vmatpush.bf16.msra.mxu0 %v461
      %574 = vmatpush.bf16.msra.mxu0 %v457
      %575 = vmatpush.bf16.msra.mxu0 %v453
      %576 = vmatpush.bf16.msra.mxu0 %v449
      %577 = vmatpush.bf16.msra.mxu0 %v445
      %578 = vmatmul.bf16.gmra.mxu0 %v240
      %v579 = vpop.f32.mrf.mxu0
      %v580 = vadd.f32 %v293, %v579
      %v581 = vpop.f32.mrf.mxu0
      %582 = vdwg.mxu0
      %583 = vmatpush.bf16.msra.mxu0 0
      %584 = vmatpush.bf16.msra.mxu0 0
      %585 = vmatpush.bf16.msra.mxu0 0
      %586 = vmatpush.bf16.msra.mxu0 0
      %587 = vmatpush.bf16.msra.mxu0 %v489
      %588 = vmatpush.bf16.msra.mxu0 %v485
      %589 = vmatpush.bf16.msra.mxu0 %v481
      %590 = vmatpush.bf16.msra.mxu0 %v477
      %591 = vmatmul.bf16.gmra.mxu0 %v542
      %v592 = vpop.f32.mrf.mxu0
      %v593 = vadd.f32 %v580, %v592
      %v594 = vpop.f32.mrf.mxu0
      %595 = vdwg.mxu0
      %596 = vmatpush.bf16.msra.mxu0 %v474
      %597 = vmatpush.bf16.msra.mxu0 %v470
      %598 = vmatpush.bf16.msra.mxu0 %v466
      %599 = vmatpush.bf16.msra.mxu0 %v462
      %600 = vmatpush.bf16.msra.mxu0 %v458
      %601 = vmatpush.bf16.msra.mxu0 %v454
      %602 = vmatpush.bf16.msra.mxu0 %v450
      %603 = vmatpush.bf16.msra.mxu0 %v446
      %604 = vmatmul.bf16.gmra.mxu0 %v240
      %v605 = vpop.f32.mrf.mxu0
      %v606 = vadd.f32 %v294, %v605
      %v607 = vpop.f32.mrf.mxu0
      %608 = vdwg.mxu0
      %609 = vmatpush.bf16.msra.mxu0 0
      %610 = vmatpush.bf16.msra.mxu0 0
      %611 = vmatpush.bf16.msra.mxu0 0
      %612 = vmatpush.bf16.msra.mxu0 0
      %613 = vmatpush.bf16.msra.mxu0 %v490
      %614 = vmatpush.bf16.msra.mxu0 %v486
      %615 = vmatpush.bf16.msra.mxu0 %v482
      %616 = vmatpush.bf16.msra.mxu0 %v478
      %617 = vmatmul.bf16.gmra.mxu0 %v542
      %v618 = vpop.f32.mrf.mxu0
      %v619 = vadd.f32 %v606, %v618
      %v620 = vpop.f32.mrf.mxu0
      %621 = vdwg.mxu0
      %622 = vmatpush.bf16.msra.mxu0 %v475
      %623 = vmatpush.bf16.msra.mxu0 %v471
      %624 = vmatpush.bf16.msra.mxu0 %v467
      %625 = vmatpush.bf16.msra.mxu0 %v463
      %626 = vmatpush.bf16.msra.mxu0 %v459
      %627 = vmatpush.bf16.msra.mxu0 %v455
      %628 = vmatpush.bf16.msra.mxu0 %v451
      %629 = vmatpush.bf16.msra.mxu0 %v447
      %630 = vmatmul.bf16.gmra.mxu0 %v240
      %v631 = vpop.f32.mrf.mxu0
      %v632 = vadd.f32 %v295, %v631
      %v633 = vpop.f32.mrf.mxu0
      %634 = vdwg.mxu0
      %635 = vmatpush.bf16.msra.mxu0 0
      %636 = vmatpush.bf16.msra.mxu0 0
      %637 = vmatpush.bf16.msra.mxu0 0
      %638 = vmatpush.bf16.msra.mxu0 0
      %639 = vmatpush.bf16.msra.mxu0 %v491
      %640 = vmatpush.bf16.msra.mxu0 %v487
      %641 = vmatpush.bf16.msra.mxu0 %v483
      %642 = vmatpush.bf16.msra.mxu0 %v479
      %643 = vmatmul.bf16.gmra.mxu0 %v542
      %v644 = vpop.f32.mrf.mxu0
      %v645 = vadd.f32 %v632, %v644
      %v646 = vpop.f32.mrf.mxu0
      %647 = vdwg.mxu0
      %v648 = vpack.c.bf16 %v593, %v567
      %v649 = vpack.c.bf16 %v645, %v619
      %650 = vst [vmem:[%s197] sm:$0xff] %v648
      %651 = vst [vmem:[%s197 + $0x8] sm:$0xff] %v649
      %p652 = scmp.lt.s32.totalorder %s15, 1
      %s653 = scalar_select %p652, %s15, 1
      %s654 = smul.addr %s653, 4
      %s655 = smul.addr %s654, 4
      %s656 = scalar_lea.vmem %s4, %s655
      // Predicated region
      $region37: #{weakpolyp_forward.3} parent=35 // pred_check
        %p657 = pneg %p122
      $region38: #{weakpolyp_forward.3} parent=35 // pred_check_branch
        %659 = sbr.rel (%p657) target = $region40
      $region39: #{weakpolyp_forward.3} parent=35 // pred_region
        _
      $region40: #{weakpolyp_forward.3} parent=35 // pred_fallthru
        _
    $region36: #{weakpolyp_forward.3} parent=5 // pred_fallthru
      _
    %p660 = scmp.le.s32.totalorder 2, %s10
    // Predicated region
    $region41: #{weakpolyp_forward.3} parent=5 // pred_check
      %p661 = pneg %p660
    $region42: #{weakpolyp_forward.3} parent=5 // pred_check_branch
      %663 = sbr.rel (%p661) target = $region44
    $region43: #{weakpolyp_forward.3} parent=5 // pred_region
      %s664 = ssub.s32 %s10, 2
      // Predicated region
      $region45: #{weakpolyp_forward.3} parent=43 // pred_check
        %p665 = pneg %p128
      $region46: #{weakpolyp_forward.3} parent=43 // pred_check_branch
        %667 = sbr.rel (%p665) target = $region48
      $region47: #{weakpolyp_forward.3} parent=43 // pred_region
        %p668 = scmp.lt.s32.totalorder %s16, 1
        %s669 = scalar_select %p668, %s16, 1
        %s670 = smul.addr %s669, 4
        %s671 = smul.addr %s670, 4
        %s672 = scalar_lea.vmem %s4, %s671
      $region48: #{weakpolyp_forward.3} parent=43 // pred_fallthru
        _
    $region44: #{weakpolyp_forward.3} parent=5 // pred_fallthru
      _
  $region6: #{weakpolyp_forward.3} parent=0 // loop_footer
    %s14 = sadd.s32 1, %s10
  $region7: #{weakpolyp_forward.3} parent=0 // loop_footer_branch
    %9 = sbr.rel target = $region3
  $region8: #{weakpolyp_forward.3} parent=0 // loop_exit
    _

// kernel: weakpolyp_forward.5
$region0: #{weakpolyp_forward.5}
  #allocation0 [shape = 'u32[]', space=smem, size = 0x4, offset = 0x4, fixed_abs, tag = 'smem constant byte address 0x4 - core index']
  #allocation1 [shape = 'u32[72,128]{1,0:T(1,128)}', space=vmem, size = 0x9000, scoped, tag = 'internal scratch']
  #allocation2 [shape = 'f32[1]{0:T(128)S(6)}', space=smem, size = 0x200, scoped, tag = 'scoped memory for weakpolyp_forward.5']
  %s0 = inlined_call_operand.vmem [shape: bf16[128,32], index: 0, kind: input, shape index: {}]
  %s1 = inlined_call_operand.vmem [shape: bf16[128,64], index: 1, kind: input, shape index: {}]
  %s2 = inlined_call_operand.vmem [shape: bf16[128,64], index: 2, kind: input, shape index: {}]
  %s3 = inlined_call_operand.vmem [shape: bf16[32,64], index: 3, kind: input, shape index: {}]
  %s4 = inlined_call_operand.vmem [shape: f32[1,64], index: 4, kind: input, shape index: {}]
  %s5 = inlined_call_operand.<no memory space> [shape: f32[1], index: 5, kind: input, shape index: {}]
  %s6 = inlined_call_operand.vmem [shape: f32[1,128], index: 6, kind: output, shape index: {}]
  %s7 = sld [smem:[#allocation0]]
  $region34: #{weakpolyp_forward.5} parent=0
    _
  %s9 = ssub.s32 1, %s7
  %s10 = scalar_select 0, %s9, %s7
  %11 = sst [smem:[#allocation2]] %s5
  // Predicated region
  $region2: #{weakpolyp_forward.5} parent=0 // pred_check
    _
  $region3: #{weakpolyp_forward.5} parent=0 // pred_check_branch
    %13 = sbr.rel (0) target = $region5
  $region4: #{weakpolyp_forward.5} parent=0 // pred_region
    _
  $region5: #{weakpolyp_forward.5} parent=0 // pred_fallthru
    _
  // Predicated region
  $region6: #{weakpolyp_forward.5} parent=0 // pred_check
    _
  $region7: #{weakpolyp_forward.5} parent=0 // pred_check_branch
    %15 = sbr.rel (0) target = $region9
  $region8: #{weakpolyp_forward.5} parent=0 // pred_region
    _
  $region9: #{weakpolyp_forward.5} parent=0 // pred_fallthru
    _
  // Predicated region
  $region10: #{weakpolyp_forward.5} parent=0 // pred_check
    _
  $region11: #{weakpolyp_forward.5} parent=0 // pred_check_branch
    %17 = sbr.rel (0) target = $region13
  $region12: #{weakpolyp_forward.5} parent=0 // pred_region
    _
  $region13: #{weakpolyp_forward.5} parent=0 // pred_fallthru
    _
  // Predicated region
  $region14: #{weakpolyp_forward.5} parent=0 // pred_check
    _
  $region15: #{weakpolyp_forward.5} parent=0 // pred_check_branch
    %19 = sbr.rel (0) target = $region17
  $region16: #{weakpolyp_forward.5} parent=0 // pred_region
    _
  $region17: #{weakpolyp_forward.5} parent=0 // pred_fallthru
    _
  // Predicated region
  $region18: #{weakpolyp_forward.5} parent=0 // pred_check
    _
  $region19: #{weakpolyp_forward.5} parent=0 // pred_check_branch
    %21 = sbr.rel (0) target = $region21
  $region20: #{weakpolyp_forward.5} parent=0 // pred_region
    _
  $region21: #{weakpolyp_forward.5} parent=0 // pred_fallthru
    _
  // Predicated region
  $region22: #{weakpolyp_forward.5} parent=0 // pred_check
    _
  $region23: #{weakpolyp_forward.5} parent=0 // pred_check_branch
    %23 = sbr.rel (0) target = $region25
  $region24: #{weakpolyp_forward.5} parent=0 // pred_region
    _
  $region25: #{weakpolyp_forward.5} parent=0 // pred_fallthru
    _
  %v25 = vld [vmem:[%s0] sm:$0xf]
  %v26 = vld [vmem:[%s0 + $0x4] sm:$0xf]
  %v27 = vld [vmem:[%s0 + $0x8] sm:$0xf]
  %v28 = vld [vmem:[%s0 + $0xc] sm:$0xf]
  %v29 = vld [vmem:[%s0 + $0x10] sm:$0xf]
  %v30 = vld [vmem:[%s0 + $0x14] sm:$0xf]
  %v31 = vld [vmem:[%s0 + $0x18] sm:$0xf]
  %v32 = vld [vmem:[%s0 + $0x1c] sm:$0xf]
  %v33 = vld [vmem:[%s0 + $0x20] sm:$0xf]
  %v34 = vld [vmem:[%s0 + $0x24] sm:$0xf]
  %v35 = vld [vmem:[%s0 + $0x28] sm:$0xf]
  %v36 = vld [vmem:[%s0 + $0x2c] sm:$0xf]
  %v37 = vld [vmem:[%s0 + $0x30] sm:$0xf]
  %v38 = vld [vmem:[%s0 + $0x34] sm:$0xf]
  %v39 = vld [vmem:[%s0 + $0x38] sm:$0xf]
  %v40 = vld [vmem:[%s0 + $0x3c] sm:$0xf]
  %v41 = vld [vmem:[%s3] sm:$0xf]
  %v42 = vld [vmem:[%s3 + $0x4] sm:$0xf]
  %v43 = vld [vmem:[%s3 + $0x8] sm:$0xf]
  %v44 = vld [vmem:[%s3 + $0xc] sm:$0xf]
  %v45 = vld [vmem:[%s4] sm:$0x1]
  %v47 = vperm.slane %v45, 0
  %v65 = vunpack.c.l.b16 %v25
  %v66 = vunpack.c.l.b16 %v26
  %v67 = vunpack.c.l.b16 %v27
  %v68 = vunpack.c.l.b16 %v28
  %v69 = vunpack.c.l.b16 %v29
  %v70 = vunpack.c.l.b16 %v30
  %v71 = vunpack.c.l.b16 %v31
  %v72 = vunpack.c.l.b16 %v32
  %v73 = vunpack.c.l.b16 %v33
  %v74 = vunpack.c.l.b16 %v34
  %v75 = vunpack.c.l.b16 %v35
  %v76 = vunpack.c.l.b16 %v36
  %v77 = vunpack.c.l.b16 %v37
  %v78 = vunpack.c.l.b16 %v38
  %v79 = vunpack.c.l.b16 %v39
  %v80 = vunpack.c.l.b16 %v40
  %v81 = vpack.c.b16 %v66, %v65
  %v82 = vpack.c.b16 %v68, %v67
  %v83 = vpack.c.b16 %v70, %v69
  %v84 = vpack.c.b16 %v72, %v71
  %v85 = vpack.c.b16 %v74, %v73
  %v86 = vpack.c.b16 %v76, %v75
  %v87 = vpack.c.b16 %v78, %v77
  %v88 = vpack.c.b16 %v80, %v79
  %v93 = vunpack.c.l.b16 %v41
  %v94 = vunpack.c.l.b16 %v42
  %v95 = vunpack.c.l.b16 %v43
  %v96 = vunpack.c.l.b16 %v44
  %v97 = vpack.c.b16 %v94, %v93
  %v98 = vpack.c.b16 %v96, %v95
  %vm101 = vcmask 261120
  %v103 = vsel %vm101, %v81, 0
  %v106 = vsel %vm101, %v82, 0
  %v109 = vsel %vm101, %v83, 0
  %v112 = vsel %vm101, %v84, 0
  %v115 = vsel %vm101, %v85, 0
  %v118 = vsel %vm101, %v86, 0
  %v121 = vsel %vm101, %v87, 0
  %v124 = vsel %vm101, %v88, 0
  %126 = vmatpush.bf16.msra.mxu0 0
  %127 = vmatpush.bf16.msra.mxu0 0
  %128 = vmatpush.bf16.msra.mxu0 0
  %129 = vmatpush.bf16.msra.mxu0 0
  %130 = vmatpush.bf16.msra.mxu0 0
  %131 = vmatpush.bf16.msra.mxu0 0
  %132 = vmatpush.bf16.msra.mxu0 %v98
  %133 = vmatpush.bf16.msra.mxu0 %v97
  %134 = vmatmul.bf16.gmra.mxu0 %v103
  %v135 = vpop.f32.mrf.mxu0
  %v136 = vadd.f32 %v47, %v135
  %v137 = vpop.f32.mrf.mxu0
  %v138 = vadd.f32 %v47, %v137
  %139 = vmatmul.bf16.gmra.mxu0 %v106
  %v140 = vpop.f32.mrf.mxu0
  %v141 = vadd.f32 %v47, %v140
  %v142 = vpop.f32.mrf.mxu0
  %v143 = vadd.f32 %v47, %v142
  %144 = vmatmul.bf16.gmra.mxu0 %v109
  %v145 = vpop.f32.mrf.mxu0
  %v146 = vadd.f32 %v47, %v145
  %v147 = vpop.f32.mrf.mxu0
  %v148 = vadd.f32 %v47, %v147
  %149 = vmatmul.bf16.gmra.mxu0 %v112
  %v150 = vpop.f32.mrf.mxu0
  %v151 = vadd.f32 %v47, %v150
  %v152 = vpop.f32.mrf.mxu0
  %v153 = vadd.f32 %v47, %v152
  %154 = vmatmul.bf16.gmra.mxu0 %v115
  %v155 = vpop.f32.mrf.mxu0
  %v156 = vadd.f32 %v47, %v155
  %v157 = vpop.f32.mrf.mxu0
  %v158 = vadd.f32 %v47, %v157
  %159 = vmatmul.bf16.gmra.mxu0 %v118
  %v160 = vpop.f32.mrf.mxu0
  %v161 = vadd.f32 %v47, %v160
  %v162 = vpop.f32.mrf.mxu0
  %v163 = vadd.f32 %v47, %v162
  %164 = vmatmul.bf16.gmra.mxu0 %v121
  %v165 = vpop.f32.mrf.mxu0
  %v166 = vadd.f32 %v47, %v165
  %v167 = vpop.f32.mrf.mxu0
  %v168 = vadd.f32 %v47, %v167
  %169 = vmatmul.bf16.gmra.mxu0 %v124
  %v170 = vpop.f32.mrf.mxu0
  %v171 = vadd.f32 %v47, %v170
  %v172 = vpop.f32.mrf.mxu0
  %v173 = vadd.f32 %v47, %v172
  %174 = vdwg.mxu0
  %v175 = vld [vmem:[%s1] sm:$0xf]
  %v176 = vld [vmem:[%s1 + $0x4] sm:$0xf]
  %v177 = vld [vmem:[%s1 + $0x8] sm:$0xf]
  %v178 = vld [vmem:[%s1 + $0xc] sm:$0xf]
  %v179 = vld [vmem:[%s1 + $0x10] sm:$0xf]
  %v180 = vld [vmem:[%s1 + $0x14] sm:$0xf]
  %v181 = vld [vmem:[%s1 + $0x18] sm:$0xf]
  %v182 = vld [vmem:[%s1 + $0x1c] sm:$0xf]
  %v183 = vld [vmem:[%s1 + $0x20] sm:$0xf]
  %v184 = vld [vmem:[%s1 + $0x24] sm:$0xf]
  %v185 = vld [vmem:[%s1 + $0x28] sm:$0xf]
  %v186 = vld [vmem:[%s1 + $0x2c] sm:$0xf]
  %v187 = vld [vmem:[%s1 + $0x30] sm:$0xf]
  %v188 = vld [vmem:[%s1 + $0x34] sm:$0xf]
  %v189 = vld [vmem:[%s1 + $0x38] sm:$0xf]
  %v190 = vld [vmem:[%s1 + $0x3c] sm:$0xf]
  %v191 = vunpack.c.l.bf16 %v175
  %v192 = vunpack.c.l.bf16 %v176
  %v193 = vunpack.c.l.bf16 %v177
  %v194 = vunpack.c.l.bf16 %v178
  %v195 = vunpack.c.l.bf16 %v179
  %v196 = vunpack.c.l.bf16 %v180
  %v197 = vunpack.c.l.bf16 %v181
  %v198 = vunpack.c.l.bf16 %v182
  %v199 = vunpack.c.l.bf16 %v183
  %v200 = vunpack.c.l.bf16 %v184
  %v201 = vunpack.c.l.bf16 %v185
  %v202 = vunpack.c.l.bf16 %v186
  %v203 = vunpack.c.l.bf16 %v187
  %v204 = vunpack.c.l.bf16 %v188
  %v205 = vunpack.c.l.bf16 %v189
  %v206 = vunpack.c.l.bf16 %v190
  %v207 = vmul.f32 %v136, %v191
  %v208 = vmul.f32 %v138, %v192
  %v209 = vmul.f32 %v141, %v193
  %v210 = vmul.f32 %v143, %v194
  %v211 = vmul.f32 %v146, %v195
  %v212 = vmul.f32 %v148, %v196
  %v213 = vmul.f32 %v151, %v197
  %v214 = vmul.f32 %v153, %v198
  %v215 = vmul.f32 %v156, %v199
  %v216 = vmul.f32 %v158, %v200
  %v217 = vmul.f32 %v161, %v201
  %v218 = vmul.f32 %v163, %v202
  %v219 = vmul.f32 %v166, %v203
  %v220 = vmul.f32 %v168, %v204
  %v221 = vmul.f32 %v171, %v205
  %v222 = vmul.f32 %v173, %v206
  %v223 = vld [vmem:[%s2] sm:$0xf]
  %v224 = vld [vmem:[%s2 + $0x4] sm:$0xf]
  %v225 = vld [vmem:[%s2 + $0x8] sm:$0xf]
  %v226 = vld [vmem:[%s2 + $0xc] sm:$0xf]
  %v227 = vld [vmem:[%s2 + $0x10] sm:$0xf]
  %v228 = vld [vmem:[%s2 + $0x14] sm:$0xf]
  %v229 = vld [vmem:[%s2 + $0x18] sm:$0xf]
  %v230 = vld [vmem:[%s2 + $0x1c] sm:$0xf]
  %v231 = vld [vmem:[%s2 + $0x20] sm:$0xf]
  %v232 = vld [vmem:[%s2 + $0x24] sm:$0xf]
  %v233 = vld [vmem:[%s2 + $0x28] sm:$0xf]
  %v234 = vld [vmem:[%s2 + $0x2c] sm:$0xf]
  %v235 = vld [vmem:[%s2 + $0x30] sm:$0xf]
  %v236 = vld [vmem:[%s2 + $0x34] sm:$0xf]
  %v237 = vld [vmem:[%s2 + $0x38] sm:$0xf]
  %v238 = vld [vmem:[%s2 + $0x3c] sm:$0xf]
  %v239 = vunpack.c.l.bf16 %v223
  %v240 = vunpack.c.l.bf16 %v224
  %v241 = vunpack.c.l.bf16 %v225
  %v242 = vunpack.c.l.bf16 %v226
  %v243 = vunpack.c.l.bf16 %v227
  %v244 = vunpack.c.l.bf16 %v228
  %v245 = vunpack.c.l.bf16 %v229
  %v246 = vunpack.c.l.bf16 %v230
  %v247 = vunpack.c.l.bf16 %v231
  %v248 = vunpack.c.l.bf16 %v232
  %v249 = vunpack.c.l.bf16 %v233
  %v250 = vunpack.c.l.bf16 %v234
  %v251 = vunpack.c.l.bf16 %v235
  %v252 = vunpack.c.l.bf16 %v236
  %v253 = vunpack.c.l.bf16 %v237
  %v254 = vunpack.c.l.bf16 %v238
  %v255 = vmul.f32 %v207, %v239
  %v256 = vmul.f32 %v208, %v240
  %v257 = vmul.f32 %v209, %v241
  %v258 = vmul.f32 %v210, %v242
  %v259 = vmul.f32 %v211, %v243
  %v260 = vmul.f32 %v212, %v244
  %v261 = vmul.f32 %v213, %v245
  %v262 = vmul.f32 %v214, %v246
  %v263 = vmul.f32 %v215, %v247
  %v264 = vmul.f32 %v216, %v248
  %v265 = vmul.f32 %v217, %v249
  %v266 = vmul.f32 %v218, %v250
  %v267 = vmul.f32 %v219, %v251
  %v268 = vmul.f32 %v220, %v252
  %v269 = vmul.f32 %v221, %v253
  %v270 = vmul.f32 %v222, %v254
  %vm271 = vcmask 523264
  %v272 = vsel %vm271, %v255, 0.0
  %273 = vadd.xlane.f32.xlu0 %v272
  %v274 = vpop.xlane.xlu0 %273
  %v275 = vsel %vm271, %v256, 0.0
  %276 = vadd.xlane.f32.xlu0 %v275
  %v277 = vpop.xlane.xlu0 %276
  %v278 = vsel %vm271, %v257, 0.0
  %279 = vadd.xlane.f32.xlu0 %v278
  %v280 = vpop.xlane.xlu0 %279
  %v281 = vsel %vm271, %v258, 0.0
  %282 = vadd.xlane.f32.xlu0 %v281
  %v283 = vpop.xlane.xlu0 %282
  %v284 = vsel %vm271, %v259, 0.0
  %285 = vadd.xlane.f32.xlu0 %v284
  %v286 = vpop.xlane.xlu0 %285
  %v287 = vsel %vm271, %v260, 0.0
  %288 = vadd.xlane.f32.xlu0 %v287
  %v289 = vpop.xlane.xlu0 %288
  %v290 = vsel %vm271, %v261, 0.0
  %291 = vadd.xlane.f32.xlu0 %v290
  %v292 = vpop.xlane.xlu0 %291
  %v293 = vsel %vm271, %v262, 0.0
  %294 = vadd.xlane.f32.xlu0 %v293
  %v295 = vpop.xlane.xlu0 %294
  %v296 = vsel %vm271, %v263, 0.0
  %297 = vadd.xlane.f32.xlu0 %v296
  %v298 = vpop.xlane.xlu0 %297
  %v299 = vsel %vm271, %v264, 0.0
  %300 = vadd.xlane.f32.xlu0 %v299
  %v301 = vpop.xlane.xlu0 %300
  %v302 = vsel %vm271, %v265, 0.0
  %303 = vadd.xlane.f32.xlu0 %v302
  %v304 = vpop.xlane.xlu0 %303
  %v305 = vsel %vm271, %v266, 0.0
  %306 = vadd.xlane.f32.xlu0 %v305
  %v307 = vpop.xlane.xlu0 %306
  %v308 = vsel %vm271, %v267, 0.0
  %309 = vadd.xlane.f32.xlu0 %v308
  %v310 = vpop.xlane.xlu0 %309
  %v311 = vsel %vm271, %v268, 0.0
  %312 = vadd.xlane.f32.xlu0 %v311
  %v313 = vpop.xlane.xlu0 %312
  %v314 = vsel %vm271, %v269, 0.0
  %315 = vadd.xlane.f32.xlu0 %v314
  %v316 = vpop.xlane.xlu0 %315
  %v317 = vsel %vm271, %v270, 0.0
  %318 = vadd.xlane.f32.xlu0 %v317
  %v319 = vpop.xlane.xlu0 %318
  %s320 = sld [smem:[#allocation2]]
  %v321 = vstv %s320
  %v322 = vadd.f32 %v274, %v321
  %v323 = vadd.f32 %v277, %v321
  %v324 = vadd.f32 %v280, %v321
  %v325 = vadd.f32 %v283, %v321
  %v326 = vadd.f32 %v286, %v321
  %v327 = vadd.f32 %v289, %v321
  %v328 = vadd.f32 %v292, %v321
  %v329 = vadd.f32 %v295, %v321
  %v330 = vadd.f32 %v298, %v321
  %v331 = vadd.f32 %v301, %v321
  %v332 = vadd.f32 %v304, %v321
  %v333 = vadd.f32 %v307, %v321
  %v334 = vadd.f32 %v310, %v321
  %v335 = vadd.f32 %v313, %v321
  %v336 = vadd.f32 %v316, %v321
  %v337 = vadd.f32 %v319, %v321
  %v354 = vlaneseq
  %v355 = vand.u32 %v354, 127
  %v356 = vperm.slane %v322, %v355
  %v357 = vadd.s32 %v355, 4294967288
  %v358 = vperm.slane %v323, %v357
  %vm359 = vcmask 130112
  %v360 = vsel %vm359, %v358, %v356
  %v361 = vadd.s32 %v355, 4294967280
  %v362 = vperm.slane %v324, %v361
  %vm363 = vcmask 195712
  %v364 = vsel %vm363, %v362, %v360
  %v365 = vadd.s32 %v355, 4294967272
  %v366 = vperm.slane %v325, %v365
  %vm367 = vcmask 261312
  %v368 = vsel %vm367, %v366, %v364
  %v369 = vadd.s32 %v355, 4294967264
  %v370 = vperm.slane %v326, %v369
  %vm371 = vcmask 326912
  %v372 = vsel %vm371, %v370, %v368
  %v373 = vadd.s32 %v355, 4294967256
  %v374 = vperm.slane %v327, %v373
  %vm375 = vcmask 392512
  %v376 = vsel %vm375, %v374, %v372
  %v377 = vadd.s32 %v355, 4294967248
  %v378 = vperm.slane %v328, %v377
  %vm379 = vcmask 458112
  %v380 = vsel %vm379, %v378, %v376
  %v381 = vadd.s32 %v355, 4294967240
  %v382 = vperm.slane %v329, %v381
  %vm383 = vcmask 523712
  %v384 = vsel %vm383, %v382, %v380
  %v385 = vadd.s32 %v355, 4294967232
  %v386 = vperm.slane %v330, %v385
  %vm387 = vcmask 589312
  %v388 = vsel %vm387, %v386, %v384
  %v389 = vadd.s32 %v355, 4294967224
  %v390 = vperm.slane %v331, %v389
  %vm391 = vcmask 654912
  %v392 = vsel %vm391, %v390, %v388
  %v393 = vadd.s32 %v355, 4294967216
  %v394 = vperm.slane %v332, %v393
  %vm395 = vcmask 720512
  %v396 = vsel %vm395, %v394, %v392
  %v397 = vadd.s32 %v355, 4294967208
  %v398 = vperm.slane %v333, %v397
  %vm399 = vcmask 786112
  %v400 = vsel %vm399, %v398, %v396
  %v401 = vadd.s32 %v355, 4294967200
  %v402 = vperm.slane %v334, %v401
  %vm403 = vcmask 851712
  %v404 = vsel %vm403, %v402, %v400
  %v405 = vadd.s32 %v355, 4294967192
  %v406 = vperm.slane %v335, %v405
  %vm407 = vcmask 917312
  %v408 = vsel %vm407, %v406, %v404
  %v409 = vadd.s32 %v355, 4294967184
  %v410 = vperm.slane %v336, %v409
  %vm411 = vcmask 982912
  %v412 = vsel %vm411, %v410, %v408
  %v413 = vadd.s32 %v355, 4294967176
  %v414 = vperm.slane %v337, %v413
  %vm415 = vcmask 1048512
  %v416 = vsel %vm415, %v414, %v412
  %418 = vst [vmem:[%s6] sm:$0x1] %v416
  // Predicated region
  $region26: #{weakpolyp_forward.5} parent=0 // pred_check
    _
  $region27: #{weakpolyp_forward.5} parent=0 // pred_check_branch
    %420 = sbr.rel (0) target = $region29
  $region28: #{weakpolyp_forward.5} parent=0 // pred_region
    _
  $region29: #{weakpolyp_forward.5} parent=0 // pred_fallthru
    _
  // Predicated region
  $region30: #{weakpolyp_forward.5} parent=0 // pred_check
    _
  $region31: #{weakpolyp_forward.5} parent=0 // pred_check_branch
    %422 = sbr.rel (0) target = $region33
  $region32: #{weakpolyp_forward.5} parent=0 // pred_region
    _
  $region33: #{weakpolyp_forward.5} parent=0 // pred_fallthru
    _

</llo_original>
